<compile_context>
chip_gen: v6e
topology: v6e:2x2x1
jax: 0.10.0
libtpu: 0.0.40
codegen_flags: <defaults>
</compile_context>

<pallas_src>
import functools

import jax
import jax.numpy as jnp
from jax.experimental import pallas as pl
from jax.experimental.pallas import tpu as pltpu


def _cnn_lstm_kernel(x_ref, wconv_ref, bconv_ref,
                     wih_ref, whh_ref, blstm_ref,
                     fc1w_ref, fc1b_ref, fc2w_ref, fc2b_ref,
                     out_ref,
                     *, kernel_size: int, t_conv: int, t_pool: int, hidden: int):
    """Whole forward pass in one kernel body (no grid)."""
    H = hidden
    B = x_ref.shape[0]

    # ---- Conv1d (valid, stride 1) + ReLU: one (B, F) row per output position ----
    conv_rows = []
    for t in range(t_conv):
        r = bconv_ref[...]                                   # (1, F), broadcasts over B
        for k in range(kernel_size):
            r = r + jnp.dot(x_ref[:, t + k, :], wconv_ref[k],
                            preferred_element_type=jnp.float32)
        conv_rows.append(jnp.maximum(r, 0.0))                # (B, F)

    # ---- MaxPool1d(2) fused with the hoisted LSTM input projection ----
    w_ih = wih_ref[...]                                      # (F, 4H), resident
    b_lstm = blstm_ref[...]                                  # (1, 4H)
    gates_x = []
    for t in range(t_pool):
        p = jnp.maximum(conv_rows[2 * t], conv_rows[2 * t + 1])          # (B, F)
        gates_x.append(jnp.dot(p, w_ih, preferred_element_type=jnp.float32) + b_lstm)

    # ---- LSTM recurrence: one MXU matmul per step, h/c carried in vregs ----
    w_hh = whh_ref[...]                                      # (H, 4H)
    h = jnp.zeros((B, H), jnp.float32)
    c = jnp.zeros((B, H), jnp.float32)
    for t in range(t_pool):
        g = gates_x[t] + jnp.dot(h, w_hh, preferred_element_type=jnp.float32)
        i_g = jax.nn.sigmoid(g[:, 0 * H:1 * H])
        f_g = jax.nn.sigmoid(g[:, 1 * H:2 * H])
        g_g = jnp.tanh(g[:, 2 * H:3 * H])
        o_g = jax.nn.sigmoid(g[:, 3 * H:4 * H])
        c = f_g * c + i_g * g_g
        h = o_g * jnp.tanh(c)

    # ---- Dropout (eval) == identity -> fc1 + ReLU -> fc2 as a lane reduction ----
    z = jnp.dot(h, fc1w_ref[...], preferred_element_type=jnp.float32) + fc1b_ref[...]
    z = jnp.maximum(z, 0.0)                                  # (B, P)
    y = jnp.sum(z * fc2w_ref[...], axis=-1, keepdims=True) + fc2b_ref[...]
    out_ref[...] = y.astype(out_ref.dtype)


def cnn_lstm_forward(x, params):
    """x: (B, T, D) float32 (batch_first, like the PyTorch module). Returns (B, 1)."""
    B, T, D = x.shape
    w_conv = params["w_conv"]            # (K, D, F): w_conv[k] == conv1d.weight[:, :, k].T
    K, _, F = w_conv.shape
    H = params["w_hh_t"].shape[0]
    t_conv = T - K + 1                   # valid conv output length
    t_pool = t_conv // 2                 # MaxPool1d(2) output length

    kernel = functools.partial(_cnn_lstm_kernel, kernel_size=K,
                               t_conv=t_conv, t_pool=t_pool, hidden=H)

    vmem = pl.BlockSpec(memory_space=pltpu.MemorySpace.VMEM)  # whole array resident in VMEM
    return pl.pallas_call(
        kernel,
        out_shape=jax.ShapeDtypeStruct((B, 1), jnp.float32),
        in_specs=[vmem] * 10,
        out_specs=vmem,
    )(x, w_conv, params["conv_b"],
      params["w_ih_t"], params["w_hh_t"], params["b"],
      params["fc1w_t"], params["fc1b"], params["fc2w_row"], params["fc2b"])


def _reference_forward(x, params):
    """Pure-JAX reference (eval mode) for correctness checking."""
    B, T, D = x.shape
    w_conv = params["w_conv"]
    K, _, F = w_conv.shape
    H = params["w_hh_t"].shape[0]
    t_conv = T - K + 1
    conv = jnp.stack(
        [sum(x[:, t + k, :] @ w_conv[k] for k in range(K)) + params["conv_b"]
         for t in range(t_conv)], axis=1)                     # (B, t_conv, F)
    conv = jnp.maximum(conv, 0.0)
    t_pool = t_conv // 2
    pooled = jnp.maximum(conv[:, 0:2 * t_pool:2, :], conv[:, 1:2 * t_pool:2, :])
    h = jnp.zeros((B, H), jnp.float32)
    c = jnp.zeros((B, H), jnp.float32)
    for t in range(t_pool):
        g = pooled[:, t, :] @ params["w_ih_t"] + h @ params["w_hh_t"] + params["b"]
        i_g = jax.nn.sigmoid(g[:, 0 * H:1 * H])
        f_g = jax.nn.sigmoid(g[:, 1 * H:2 * H])
        g_g = jnp.tanh(g[:, 2 * H:3 * H])
        o_g = jax.nn.sigmoid(g[:, 3 * H:4 * H])
        c = f_g * c + i_g * g_g
        h = o_g * jnp.tanh(c)
    z = jnp.maximum(h @ params["fc1w_t"] + params["fc1b"], 0.0)
    return jnp.sum(z * params["fc2w_row"], axis=-1, keepdims=True) + params["fc2b"]


def init_params(key, input_size, cnn_filters, kernel_size, lstm_units, dense_units):
    """Deterministic synthetic parameters, PyTorch-style uniform init, kernel-friendly layout.

    When loading real PyTorch weights: w_conv[k] = conv1d.weight[:, :, k].T,
    w_ih_t = weight_ih_l0.T, w_hh_t = weight_hh_l0.T, b = bias_ih_l0 + bias_hh_l0,
    fc1w_t = fc1.weight.T, fc2w_row = fc2.weight (already (1, P)).
    """
    D, F, K, H, P = input_size, cnn_filters, kernel_size, lstm_units, dense_units
    ks = jax.random.split(key, 9)
    u = lambda k, shape, sc: jax.random.uniform(k, shape, jnp.float32, -sc, sc)
    s_conv = 1.0 / jnp.sqrt(jnp.float32(D * K))
    s_lstm = 1.0 / jnp.sqrt(jnp.float32(H))
    s_fc1 = 1.0 / jnp.sqrt(jnp.float32(H))
    s_fc2 = 1.0 / jnp.sqrt(jnp.float32(P))
    return {
        "w_conv":   u(ks[0], (K, D, F), s_conv),   # conv1d weight, (tap, in, out) layout
        "conv_b":   u(ks[1], (1, F), s_conv),
        "w_ih_t":   u(ks[2], (F, 4 * H), s_lstm),
        "w_hh_t":   u(ks[3], (H, 4 * H), s_lstm),
        "b":        u(ks[4], (1, 4 * H), s_lstm),  # b_ih + b_hh folded
        "fc1w_t":   u(ks[5], (H, P), s_fc1),
        "fc1b":     u(ks[6], (1, P), s_fc1),
        "fc2w_row": u(ks[7], (1, P), s_fc2),
        "fc2b":     u(ks[8], (1, 1), s_fc2),
    }


if __name__ == "__main__":
    # Small shapes consistent with the module: batch=2, seq=8, input_size=16,
    # cnn_filters=32, kernel_size=3, lstm_units=32 (4H=128 keeps gates lane-dense),
    # dense_units=16.  Conv output length 6 -> pooled LSTM length 3.
    B, T, D = 2, 8, 16
    F, K = 32, 3
    H, P = 32, 16

    key = jax.random.PRNGKey(0)
    kx, kp = jax.random.split(key)
    x = jax.random.normal(kx, (B, T, D), jnp.float32)
    params = init_params(kp, D, F, K, H, P)

    out = jax.block_until_ready(cnn_lstm_forward(x, params))
    ref = _reference_forward(x, params)

    assert out.shape == (B, 1)
    assert jnp.allclose(out, ref, atol=1e-4, rtol=1e-4), (out, ref)

    print("KERNEL_OK")
</pallas_src>

<mosaic_0001>
module attributes {stable_mosaic.version = 11 : i64} {
  func.func @_cnn_lstm_kernel(%arg0: memref<2x8x16xf32, #tpu.memory_space<vmem>>, %arg1: memref<3x16x32xf32, #tpu.memory_space<vmem>>, %arg2: memref<1x32xf32, #tpu.memory_space<vmem>>, %arg3: memref<32x128xf32, #tpu.memory_space<vmem>>, %arg4: memref<32x128xf32, #tpu.memory_space<vmem>>, %arg5: memref<1x128xf32, #tpu.memory_space<vmem>>, %arg6: memref<32x16xf32, #tpu.memory_space<vmem>>, %arg7: memref<1x16xf32, #tpu.memory_space<vmem>>, %arg8: memref<1x16xf32, #tpu.memory_space<vmem>>, %arg9: memref<1x1xf32, #tpu.memory_space<vmem>>, %arg10: memref<2x1xf32, #tpu.memory_space<vmem>>) attributes {dimension_semantics = [], scalar_prefetch = 0 : i64, scratch_operands = 0 : i64, tpu.core_type = #tpu.core_type<tc>} {
    %c0 = arith.constant 0 : index
    %c0_0 = arith.constant 0 : index
    %0 = vector.load %arg2[%c0, %c0_0] : memref<1x32xf32, #tpu.memory_space<vmem>>, vector<1x32xf32>
    %c0_1 = arith.constant 0 : index
    %c0_2 = arith.constant 0 : index
    %c0_3 = arith.constant 0 : index
    %1 = vector.load %arg0[%c0_1, %c0_2, %c0_3] : memref<2x8x16xf32, #tpu.memory_space<vmem>>, vector<2x1x16xf32>
    %2 = vector.shape_cast %1 : vector<2x1x16xf32> to vector<2x16xf32>
    %c0_4 = arith.constant 0 : index
    %c0_5 = arith.constant 0 : index
    %c0_6 = arith.constant 0 : index
    %3 = vector.load %arg1[%c0_4, %c0_5, %c0_6] : memref<3x16x32xf32, #tpu.memory_space<vmem>>, vector<1x16x32xf32>
    %4 = vector.shape_cast %3 : vector<1x16x32xf32> to vector<16x32xf32>
    %cst = arith.constant dense<0.000000e+00> : vector<2x32xf32>
    %5 = tpu.matmul %2, %4, %cst {dimension_numbers = #tpu.dot_dimension_numbers<[1], [0], [0], [1], [0, 0, 1, 1], [], []>} : vector<2x16xf32>, vector<16x32xf32>, vector<2x32xf32> -> vector<2x32xf32>
    %6 = vector.broadcast %0 : vector<1x32xf32> to vector<2x32xf32>
    %7 = arith.addf %6, %5 : vector<2x32xf32>
    %c0_7 = arith.constant 0 : index
    %c1 = arith.constant 1 : index
    %c0_8 = arith.constant 0 : index
    %8 = vector.load %arg0[%c0_7, %c1, %c0_8] : memref<2x8x16xf32, #tpu.memory_space<vmem>>, vector<2x1x16xf32>
    %9 = vector.shape_cast %8 : vector<2x1x16xf32> to vector<2x16xf32>
    %c1_9 = arith.constant 1 : index
    %c0_10 = arith.constant 0 : index
    %c0_11 = arith.constant 0 : index
    %10 = vector.load %arg1[%c1_9, %c0_10, %c0_11] : memref<3x16x32xf32, #tpu.memory_space<vmem>>, vector<1x16x32xf32>
    %11 = vector.shape_cast %10 : vector<1x16x32xf32> to vector<16x32xf32>
    %cst_12 = arith.constant dense<0.000000e+00> : vector<2x32xf32>
    %12 = tpu.matmul %9, %11, %cst_12 {dimension_numbers = #tpu.dot_dimension_numbers<[1], [0], [0], [1], [0, 0, 1, 1], [], []>} : vector<2x16xf32>, vector<16x32xf32>, vector<2x32xf32> -> vector<2x32xf32>
    %13 = arith.addf %7, %12 : vector<2x32xf32>
    %c0_13 = arith.constant 0 : index
    %c2 = arith.constant 2 : index
    %c0_14 = arith.constant 0 : index
    %14 = vector.load %arg0[%c0_13, %c2, %c0_14] : memref<2x8x16xf32, #tpu.memory_space<vmem>>, vector<2x1x16xf32>
    %15 = vector.shape_cast %14 : vector<2x1x16xf32> to vector<2x16xf32>
    %c2_15 = arith.constant 2 : index
    %c0_16 = arith.constant 0 : index
    %c0_17 = arith.constant 0 : index
    %16 = vector.load %arg1[%c2_15, %c0_16, %c0_17] : memref<3x16x32xf32, #tpu.memory_space<vmem>>, vector<1x16x32xf32>
    %17 = vector.shape_cast %16 : vector<1x16x32xf32> to vector<16x32xf32>
    %cst_18 = arith.constant dense<0.000000e+00> : vector<2x32xf32>
    %18 = tpu.matmul %15, %17, %cst_18 {dimension_numbers = #tpu.dot_dimension_numbers<[1], [0], [0], [1], [0, 0, 1, 1], [], []>} : vector<2x16xf32>, vector<16x32xf32>, vector<2x32xf32> -> vector<2x32xf32>
    %19 = arith.addf %13, %18 : vector<2x32xf32>
    %cst_19 = arith.constant 0.000000e+00 : f32
    %20 = vector.broadcast %cst_19 : f32 to vector<2x32xf32>
    %21 = arith.maximumf %19, %20 : vector<2x32xf32>
    %c0_20 = arith.constant 0 : index
    %c0_21 = arith.constant 0 : index
    %22 = vector.load %arg2[%c0_20, %c0_21] : memref<1x32xf32, #tpu.memory_space<vmem>>, vector<1x32xf32>
    %c0_22 = arith.constant 0 : index
    %c1_23 = arith.constant 1 : index
    %c0_24 = arith.constant 0 : index
    %23 = vector.load %arg0[%c0_22, %c1_23, %c0_24] : memref<2x8x16xf32, #tpu.memory_space<vmem>>, vector<2x1x16xf32>
    %24 = vector.shape_cast %23 : vector<2x1x16xf32> to vector<2x16xf32>
    %c0_25 = arith.constant 0 : index
    %c0_26 = arith.constant 0 : index
    %c0_27 = arith.constant 0 : index
    %25 = vector.load %arg1[%c0_25, %c0_26, %c0_27] : memref<3x16x32xf32, #tpu.memory_space<vmem>>, vector<1x16x32xf32>
    %26 = vector.shape_cast %25 : vector<1x16x32xf32> to vector<16x32xf32>
    %cst_28 = arith.constant dense<0.000000e+00> : vector<2x32xf32>
    %27 = tpu.matmul %24, %26, %cst_28 {dimension_numbers = #tpu.dot_dimension_numbers<[1], [0], [0], [1], [0, 0, 1, 1], [], []>} : vector<2x16xf32>, vector<16x32xf32>, vector<2x32xf32> -> vector<2x32xf32>
    %28 = vector.broadcast %22 : vector<1x32xf32> to vector<2x32xf32>
    %29 = arith.addf %28, %27 : vector<2x32xf32>
    %c0_29 = arith.constant 0 : index
    %c2_30 = arith.constant 2 : index
    %c0_31 = arith.constant 0 : index
    %30 = vector.load %arg0[%c0_29, %c2_30, %c0_31] : memref<2x8x16xf32, #tpu.memory_space<vmem>>, vector<2x1x16xf32>
    %31 = vector.shape_cast %30 : vector<2x1x16xf32> to vector<2x16xf32>
    %c1_32 = arith.constant 1 : index
    %c0_33 = arith.constant 0 : index
    %c0_34 = arith.constant 0 : index
    %32 = vector.load %arg1[%c1_32, %c0_33, %c0_34] : memref<3x16x32xf32, #tpu.memory_space<vmem>>, vector<1x16x32xf32>
    %33 = vector.shape_cast %32 : vector<1x16x32xf32> to vector<16x32xf32>
    %cst_35 = arith.constant dense<0.000000e+00> : vector<2x32xf32>
    %34 = tpu.matmul %31, %33, %cst_35 {dimension_numbers = #tpu.dot_dimension_numbers<[1], [0], [0], [1], [0, 0, 1, 1], [], []>} : vector<2x16xf32>, vector<16x32xf32>, vector<2x32xf32> -> vector<2x32xf32>
    %35 = arith.addf %29, %34 : vector<2x32xf32>
    %c0_36 = arith.constant 0 : index
    %c3 = arith.constant 3 : index
    %c0_37 = arith.constant 0 : index
    %36 = vector.load %arg0[%c0_36, %c3, %c0_37] : memref<2x8x16xf32, #tpu.memory_space<vmem>>, vector<2x1x16xf32>
    %37 = vector.shape_cast %36 : vector<2x1x16xf32> to vector<2x16xf32>
    %c2_38 = arith.constant 2 : index
    %c0_39 = arith.constant 0 : index
    %c0_40 = arith.constant 0 : index
    %38 = vector.load %arg1[%c2_38, %c0_39, %c0_40] : memref<3x16x32xf32, #tpu.memory_space<vmem>>, vector<1x16x32xf32>
    %39 = vector.shape_cast %38 : vector<1x16x32xf32> to vector<16x32xf32>
    %cst_41 = arith.constant dense<0.000000e+00> : vector<2x32xf32>
    %40 = tpu.matmul %37, %39, %cst_41 {dimension_numbers = #tpu.dot_dimension_numbers<[1], [0], [0], [1], [0, 0, 1, 1], [], []>} : vector<2x16xf32>, vector<16x32xf32>, vector<2x32xf32> -> vector<2x32xf32>
    %41 = arith.addf %35, %40 : vector<2x32xf32>
    %cst_42 = arith.constant 0.000000e+00 : f32
    %42 = vector.broadcast %cst_42 : f32 to vector<2x32xf32>
    %43 = arith.maximumf %41, %42 : vector<2x32xf32>
    %c0_43 = arith.constant 0 : index
    %c0_44 = arith.constant 0 : index
    %44 = vector.load %arg2[%c0_43, %c0_44] : memref<1x32xf32, #tpu.memory_space<vmem>>, vector<1x32xf32>
    %c0_45 = arith.constant 0 : index
    %c2_46 = arith.constant 2 : index
    %c0_47 = arith.constant 0 : index
    %45 = vector.load %arg0[%c0_45, %c2_46, %c0_47] : memref<2x8x16xf32, #tpu.memory_space<vmem>>, vector<2x1x16xf32>
    %46 = vector.shape_cast %45 : vector<2x1x16xf32> to vector<2x16xf32>
    %c0_48 = arith.constant 0 : index
    %c0_49 = arith.constant 0 : index
    %c0_50 = arith.constant 0 : index
    %47 = vector.load %arg1[%c0_48, %c0_49, %c0_50] : memref<3x16x32xf32, #tpu.memory_space<vmem>>, vector<1x16x32xf32>
    %48 = vector.shape_cast %47 : vector<1x16x32xf32> to vector<16x32xf32>
    %cst_51 = arith.constant dense<0.000000e+00> : vector<2x32xf32>
    %49 = tpu.matmul %46, %48, %cst_51 {dimension_numbers = #tpu.dot_dimension_numbers<[1], [0], [0], [1], [0, 0, 1, 1], [], []>} : vector<2x16xf32>, vector<16x32xf32>, vector<2x32xf32> -> vector<2x32xf32>
    %50 = vector.broadcast %44 : vector<1x32xf32> to vector<2x32xf32>
    %51 = arith.addf %50, %49 : vector<2x32xf32>
    %c0_52 = arith.constant 0 : index
    %c3_53 = arith.constant 3 : index
    %c0_54 = arith.constant 0 : index
    %52 = vector.load %arg0[%c0_52, %c3_53, %c0_54] : memref<2x8x16xf32, #tpu.memory_space<vmem>>, vector<2x1x16xf32>
    %53 = vector.shape_cast %52 : vector<2x1x16xf32> to vector<2x16xf32>
    %c1_55 = arith.constant 1 : index
    %c0_56 = arith.constant 0 : index
    %c0_57 = arith.constant 0 : index
    %54 = vector.load %arg1[%c1_55, %c0_56, %c0_57] : memref<3x16x32xf32, #tpu.memory_space<vmem>>, vector<1x16x32xf32>
    %55 = vector.shape_cast %54 : vector<1x16x32xf32> to vector<16x32xf32>
    %cst_58 = arith.constant dense<0.000000e+00> : vector<2x32xf32>
    %56 = tpu.matmul %53, %55, %cst_58 {dimension_numbers = #tpu.dot_dimension_numbers<[1], [0], [0], [1], [0, 0, 1, 1], [], []>} : vector<2x16xf32>, vector<16x32xf32>, vector<2x32xf32> -> vector<2x32xf32>
    %57 = arith.addf %51, %56 : vector<2x32xf32>
    %c0_59 = arith.constant 0 : index
    %c4 = arith.constant 4 : index
    %c0_60 = arith.constant 0 : index
    %58 = vector.load %arg0[%c0_59, %c4, %c0_60] : memref<2x8x16xf32, #tpu.memory_space<vmem>>, vector<2x1x16xf32>
    %59 = vector.shape_cast %58 : vector<2x1x16xf32> to vector<2x16xf32>
    %c2_61 = arith.constant 2 : index
    %c0_62 = arith.constant 0 : index
    %c0_63 = arith.constant 0 : index
    %60 = vector.load %arg1[%c2_61, %c0_62, %c0_63] : memref<3x16x32xf32, #tpu.memory_space<vmem>>, vector<1x16x32xf32>
    %61 = vector.shape_cast %60 : vector<1x16x32xf32> to vector<16x32xf32>
    %cst_64 = arith.constant dense<0.000000e+00> : vector<2x32xf32>
    %62 = tpu.matmul %59, %61, %cst_64 {dimension_numbers = #tpu.dot_dimension_numbers<[1], [0], [0], [1], [0, 0, 1, 1], [], []>} : vector<2x16xf32>, vector<16x32xf32>, vector<2x32xf32> -> vector<2x32xf32>
    %63 = arith.addf %57, %62 : vector<2x32xf32>
    %cst_65 = arith.constant 0.000000e+00 : f32
    %64 = vector.broadcast %cst_65 : f32 to vector<2x32xf32>
    %65 = arith.maximumf %63, %64 : vector<2x32xf32>
    %c0_66 = arith.constant 0 : index
    %c0_67 = arith.constant 0 : index
    %66 = vector.load %arg2[%c0_66, %c0_67] : memref<1x32xf32, #tpu.memory_space<vmem>>, vector<1x32xf32>
    %c0_68 = arith.constant 0 : index
    %c3_69 = arith.constant 3 : index
    %c0_70 = arith.constant 0 : index
    %67 = vector.load %arg0[%c0_68, %c3_69, %c0_70] : memref<2x8x16xf32, #tpu.memory_space<vmem>>, vector<2x1x16xf32>
    %68 = vector.shape_cast %67 : vector<2x1x16xf32> to vector<2x16xf32>
    %c0_71 = arith.constant 0 : index
    %c0_72 = arith.constant 0 : index
    %c0_73 = arith.constant 0 : index
    %69 = vector.load %arg1[%c0_71, %c0_72, %c0_73] : memref<3x16x32xf32, #tpu.memory_space<vmem>>, vector<1x16x32xf32>
    %70 = vector.shape_cast %69 : vector<1x16x32xf32> to vector<16x32xf32>
    %cst_74 = arith.constant dense<0.000000e+00> : vector<2x32xf32>
    %71 = tpu.matmul %68, %70, %cst_74 {dimension_numbers = #tpu.dot_dimension_numbers<[1], [0], [0], [1], [0, 0, 1, 1], [], []>} : vector<2x16xf32>, vector<16x32xf32>, vector<2x32xf32> -> vector<2x32xf32>
    %72 = vector.broadcast %66 : vector<1x32xf32> to vector<2x32xf32>
    %73 = arith.addf %72, %71 : vector<2x32xf32>
    %c0_75 = arith.constant 0 : index
    %c4_76 = arith.constant 4 : index
    %c0_77 = arith.constant 0 : index
    %74 = vector.load %arg0[%c0_75, %c4_76, %c0_77] : memref<2x8x16xf32, #tpu.memory_space<vmem>>, vector<2x1x16xf32>
    %75 = vector.shape_cast %74 : vector<2x1x16xf32> to vector<2x16xf32>
    %c1_78 = arith.constant 1 : index
    %c0_79 = arith.constant 0 : index
    %c0_80 = arith.constant 0 : index
    %76 = vector.load %arg1[%c1_78, %c0_79, %c0_80] : memref<3x16x32xf32, #tpu.memory_space<vmem>>, vector<1x16x32xf32>
    %77 = vector.shape_cast %76 : vector<1x16x32xf32> to vector<16x32xf32>
    %cst_81 = arith.constant dense<0.000000e+00> : vector<2x32xf32>
    %78 = tpu.matmul %75, %77, %cst_81 {dimension_numbers = #tpu.dot_dimension_numbers<[1], [0], [0], [1], [0, 0, 1, 1], [], []>} : vector<2x16xf32>, vector<16x32xf32>, vector<2x32xf32> -> vector<2x32xf32>
    %79 = arith.addf %73, %78 : vector<2x32xf32>
    %c0_82 = arith.constant 0 : index
    %c5 = arith.constant 5 : index
    %c0_83 = arith.constant 0 : index
    %80 = vector.load %arg0[%c0_82, %c5, %c0_83] : memref<2x8x16xf32, #tpu.memory_space<vmem>>, vector<2x1x16xf32>
    %81 = vector.shape_cast %80 : vector<2x1x16xf32> to vector<2x16xf32>
    %c2_84 = arith.constant 2 : index
    %c0_85 = arith.constant 0 : index
    %c0_86 = arith.constant 0 : index
    %82 = vector.load %arg1[%c2_84, %c0_85, %c0_86] : memref<3x16x32xf32, #tpu.memory_space<vmem>>, vector<1x16x32xf32>
    %83 = vector.shape_cast %82 : vector<1x16x32xf32> to vector<16x32xf32>
    %cst_87 = arith.constant dense<0.000000e+00> : vector<2x32xf32>
    %84 = tpu.matmul %81, %83, %cst_87 {dimension_numbers = #tpu.dot_dimension_numbers<[1], [0], [0], [1], [0, 0, 1, 1], [], []>} : vector<2x16xf32>, vector<16x32xf32>, vector<2x32xf32> -> vector<2x32xf32>
    %85 = arith.addf %79, %84 : vector<2x32xf32>
    %cst_88 = arith.constant 0.000000e+00 : f32
    %86 = vector.broadcast %cst_88 : f32 to vector<2x32xf32>
    %87 = arith.maximumf %85, %86 : vector<2x32xf32>
    %c0_89 = arith.constant 0 : index
    %c0_90 = arith.constant 0 : index
    %88 = vector.load %arg2[%c0_89, %c0_90] : memref<1x32xf32, #tpu.memory_space<vmem>>, vector<1x32xf32>
    %c0_91 = arith.constant 0 : index
    %c4_92 = arith.constant 4 : index
    %c0_93 = arith.constant 0 : index
    %89 = vector.load %arg0[%c0_91, %c4_92, %c0_93] : memref<2x8x16xf32, #tpu.memory_space<vmem>>, vector<2x1x16xf32>
    %90 = vector.shape_cast %89 : vector<2x1x16xf32> to vector<2x16xf32>
    %c0_94 = arith.constant 0 : index
    %c0_95 = arith.constant 0 : index
    %c0_96 = arith.constant 0 : index
    %91 = vector.load %arg1[%c0_94, %c0_95, %c0_96] : memref<3x16x32xf32, #tpu.memory_space<vmem>>, vector<1x16x32xf32>
    %92 = vector.shape_cast %91 : vector<1x16x32xf32> to vector<16x32xf32>
    %cst_97 = arith.constant dense<0.000000e+00> : vector<2x32xf32>
    %93 = tpu.matmul %90, %92, %cst_97 {dimension_numbers = #tpu.dot_dimension_numbers<[1], [0], [0], [1], [0, 0, 1, 1], [], []>} : vector<2x16xf32>, vector<16x32xf32>, vector<2x32xf32> -> vector<2x32xf32>
    %94 = vector.broadcast %88 : vector<1x32xf32> to vector<2x32xf32>
    %95 = arith.addf %94, %93 : vector<2x32xf32>
    %c0_98 = arith.constant 0 : index
    %c5_99 = arith.constant 5 : index
    %c0_100 = arith.constant 0 : index
    %96 = vector.load %arg0[%c0_98, %c5_99, %c0_100] : memref<2x8x16xf32, #tpu.memory_space<vmem>>, vector<2x1x16xf32>
    %97 = vector.shape_cast %96 : vector<2x1x16xf32> to vector<2x16xf32>
    %c1_101 = arith.constant 1 : index
    %c0_102 = arith.constant 0 : index
    %c0_103 = arith.constant 0 : index
    %98 = vector.load %arg1[%c1_101, %c0_102, %c0_103] : memref<3x16x32xf32, #tpu.memory_space<vmem>>, vector<1x16x32xf32>
    %99 = vector.shape_cast %98 : vector<1x16x32xf32> to vector<16x32xf32>
    %cst_104 = arith.constant dense<0.000000e+00> : vector<2x32xf32>
    %100 = tpu.matmul %97, %99, %cst_104 {dimension_numbers = #tpu.dot_dimension_numbers<[1], [0], [0], [1], [0, 0, 1, 1], [], []>} : vector<2x16xf32>, vector<16x32xf32>, vector<2x32xf32> -> vector<2x32xf32>
    %101 = arith.addf %95, %100 : vector<2x32xf32>
    %c0_105 = arith.constant 0 : index
    %c6 = arith.constant 6 : index
    %c0_106 = arith.constant 0 : index
    %102 = vector.load %arg0[%c0_105, %c6, %c0_106] : memref<2x8x16xf32, #tpu.memory_space<vmem>>, vector<2x1x16xf32>
    %103 = vector.shape_cast %102 : vector<2x1x16xf32> to vector<2x16xf32>
    %c2_107 = arith.constant 2 : index
    %c0_108 = arith.constant 0 : index
    %c0_109 = arith.constant 0 : index
    %104 = vector.load %arg1[%c2_107, %c0_108, %c0_109] : memref<3x16x32xf32, #tpu.memory_space<vmem>>, vector<1x16x32xf32>
    %105 = vector.shape_cast %104 : vector<1x16x32xf32> to vector<16x32xf32>
    %cst_110 = arith.constant dense<0.000000e+00> : vector<2x32xf32>
    %106 = tpu.matmul %103, %105, %cst_110 {dimension_numbers = #tpu.dot_dimension_numbers<[1], [0], [0], [1], [0, 0, 1, 1], [], []>} : vector<2x16xf32>, vector<16x32xf32>, vector<2x32xf32> -> vector<2x32xf32>
    %107 = arith.addf %101, %106 : vector<2x32xf32>
    %cst_111 = arith.constant 0.000000e+00 : f32
    %108 = vector.broadcast %cst_111 : f32 to vector<2x32xf32>
    %109 = arith.maximumf %107, %108 : vector<2x32xf32>
    %c0_112 = arith.constant 0 : index
    %c0_113 = arith.constant 0 : index
    %110 = vector.load %arg2[%c0_112, %c0_113] : memref<1x32xf32, #tpu.memory_space<vmem>>, vector<1x32xf32>
    %c0_114 = arith.constant 0 : index
    %c5_115 = arith.constant 5 : index
    %c0_116 = arith.constant 0 : index
    %111 = vector.load %arg0[%c0_114, %c5_115, %c0_116] : memref<2x8x16xf32, #tpu.memory_space<vmem>>, vector<2x1x16xf32>
    %112 = vector.shape_cast %111 : vector<2x1x16xf32> to vector<2x16xf32>
    %c0_117 = arith.constant 0 : index
    %c0_118 = arith.constant 0 : index
    %c0_119 = arith.constant 0 : index
    %113 = vector.load %arg1[%c0_117, %c0_118, %c0_119] : memref<3x16x32xf32, #tpu.memory_space<vmem>>, vector<1x16x32xf32>
    %114 = vector.shape_cast %113 : vector<1x16x32xf32> to vector<16x32xf32>
    %cst_120 = arith.constant dense<0.000000e+00> : vector<2x32xf32>
    %115 = tpu.matmul %112, %114, %cst_120 {dimension_numbers = #tpu.dot_dimension_numbers<[1], [0], [0], [1], [0, 0, 1, 1], [], []>} : vector<2x16xf32>, vector<16x32xf32>, vector<2x32xf32> -> vector<2x32xf32>
    %116 = vector.broadcast %110 : vector<1x32xf32> to vector<2x32xf32>
    %117 = arith.addf %116, %115 : vector<2x32xf32>
    %c0_121 = arith.constant 0 : index
    %c6_122 = arith.constant 6 : index
    %c0_123 = arith.constant 0 : index
    %118 = vector.load %arg0[%c0_121, %c6_122, %c0_123] : memref<2x8x16xf32, #tpu.memory_space<vmem>>, vector<2x1x16xf32>
    %119 = vector.shape_cast %118 : vector<2x1x16xf32> to vector<2x16xf32>
    %c1_124 = arith.constant 1 : index
    %c0_125 = arith.constant 0 : index
    %c0_126 = arith.constant 0 : index
    %120 = vector.load %arg1[%c1_124, %c0_125, %c0_126] : memref<3x16x32xf32, #tpu.memory_space<vmem>>, vector<1x16x32xf32>
    %121 = vector.shape_cast %120 : vector<1x16x32xf32> to vector<16x32xf32>
    %cst_127 = arith.constant dense<0.000000e+00> : vector<2x32xf32>
    %122 = tpu.matmul %119, %121, %cst_127 {dimension_numbers = #tpu.dot_dimension_numbers<[1], [0], [0], [1], [0, 0, 1, 1], [], []>} : vector<2x16xf32>, vector<16x32xf32>, vector<2x32xf32> -> vector<2x32xf32>
    %123 = arith.addf %117, %122 : vector<2x32xf32>
    %c0_128 = arith.constant 0 : index
    %c7 = arith.constant 7 : index
    %c0_129 = arith.constant 0 : index
    %124 = vector.load %arg0[%c0_128, %c7, %c0_129] : memref<2x8x16xf32, #tpu.memory_space<vmem>>, vector<2x1x16xf32>
    %125 = vector.shape_cast %124 : vector<2x1x16xf32> to vector<2x16xf32>
    %c2_130 = arith.constant 2 : index
    %c0_131 = arith.constant 0 : index
    %c0_132 = arith.constant 0 : index
    %126 = vector.load %arg1[%c2_130, %c0_131, %c0_132] : memref<3x16x32xf32, #tpu.memory_space<vmem>>, vector<1x16x32xf32>
    %127 = vector.shape_cast %126 : vector<1x16x32xf32> to vector<16x32xf32>
    %cst_133 = arith.constant dense<0.000000e+00> : vector<2x32xf32>
    %128 = tpu.matmul %125, %127, %cst_133 {dimension_numbers = #tpu.dot_dimension_numbers<[1], [0], [0], [1], [0, 0, 1, 1], [], []>} : vector<2x16xf32>, vector<16x32xf32>, vector<2x32xf32> -> vector<2x32xf32>
    %129 = arith.addf %123, %128 : vector<2x32xf32>
    %cst_134 = arith.constant 0.000000e+00 : f32
    %130 = vector.broadcast %cst_134 : f32 to vector<2x32xf32>
    %131 = arith.maximumf %129, %130 : vector<2x32xf32>
    %c0_135 = arith.constant 0 : index
    %c0_136 = arith.constant 0 : index
    %132 = vector.load %arg3[%c0_135, %c0_136] : memref<32x128xf32, #tpu.memory_space<vmem>>, vector<32x128xf32>
    %c0_137 = arith.constant 0 : index
    %c0_138 = arith.constant 0 : index
    %133 = vector.load %arg5[%c0_137, %c0_138] : memref<1x128xf32, #tpu.memory_space<vmem>>, vector<1x128xf32>
    %134 = arith.maximumf %21, %43 : vector<2x32xf32>
    %cst_139 = arith.constant dense<0.000000e+00> : vector<2x128xf32>
    %135 = tpu.matmul %134, %132, %cst_139 {dimension_numbers = #tpu.dot_dimension_numbers<[1], [0], [0], [1], [0, 0, 1, 1], [], []>} : vector<2x32xf32>, vector<32x128xf32>, vector<2x128xf32> -> vector<2x128xf32>
    %136 = vector.broadcast %133 : vector<1x128xf32> to vector<2x128xf32>
    %137 = arith.addf %135, %136 : vector<2x128xf32>
    %138 = arith.maximumf %65, %87 : vector<2x32xf32>
    %cst_140 = arith.constant dense<0.000000e+00> : vector<2x128xf32>
    %139 = tpu.matmul %138, %132, %cst_140 {dimension_numbers = #tpu.dot_dimension_numbers<[1], [0], [0], [1], [0, 0, 1, 1], [], []>} : vector<2x32xf32>, vector<32x128xf32>, vector<2x128xf32> -> vector<2x128xf32>
    %140 = vector.broadcast %133 : vector<1x128xf32> to vector<2x128xf32>
    %141 = arith.addf %139, %140 : vector<2x128xf32>
    %142 = arith.maximumf %109, %131 : vector<2x32xf32>
    %cst_141 = arith.constant dense<0.000000e+00> : vector<2x128xf32>
    %143 = tpu.matmul %142, %132, %cst_141 {dimension_numbers = #tpu.dot_dimension_numbers<[1], [0], [0], [1], [0, 0, 1, 1], [], []>} : vector<2x32xf32>, vector<32x128xf32>, vector<2x128xf32> -> vector<2x128xf32>
    %144 = vector.broadcast %133 : vector<1x128xf32> to vector<2x128xf32>
    %145 = arith.addf %143, %144 : vector<2x128xf32>
    %c0_142 = arith.constant 0 : index
    %c0_143 = arith.constant 0 : index
    %146 = vector.load %arg4[%c0_142, %c0_143] : memref<32x128xf32, #tpu.memory_space<vmem>>, vector<32x128xf32>
    %cst_144 = arith.constant 0.000000e+00 : f32
    %147 = vector.broadcast %cst_144 : f32 to vector<2x32xf32>
    %cst_145 = arith.constant 0.000000e+00 : f32
    %148 = vector.broadcast %cst_145 : f32 to vector<2x32xf32>
    %cst_146 = arith.constant dense<0.000000e+00> : vector<2x128xf32>
    %149 = tpu.matmul %147, %146, %cst_146 {dimension_numbers = #tpu.dot_dimension_numbers<[1], [0], [0], [1], [0, 0, 1, 1], [], []>} : vector<2x32xf32>, vector<32x128xf32>, vector<2x128xf32> -> vector<2x128xf32>
    %150 = arith.addf %137, %149 : vector<2x128xf32>
    %151 = vector.extract_strided_slice %150 {offsets = [0, 0], sizes = [2, 32], strides = [1, 1]} : vector<2x128xf32> to vector<2x32xf32>
    %152 = arith.negf %151 : vector<2x32xf32>
    %153 = math.exp %152 : vector<2x32xf32>
    %cst_147 = arith.constant 1.000000e+00 : f32
    %154 = vector.broadcast %cst_147 : f32 to vector<2x32xf32>
    %155 = arith.addf %154, %153 : vector<2x32xf32>
    %156 = arith.divf %154, %155 : vector<2x32xf32>
    %157 = vector.extract_strided_slice %150 {offsets = [0, 32], sizes = [2, 32], strides = [1, 1]} : vector<2x128xf32> to vector<2x32xf32>
    %158 = arith.negf %157 : vector<2x32xf32>
    %159 = math.exp %158 : vector<2x32xf32>
    %cst_148 = arith.constant 1.000000e+00 : f32
    %160 = vector.broadcast %cst_148 : f32 to vector<2x32xf32>
    %161 = arith.addf %160, %159 : vector<2x32xf32>
    %162 = arith.divf %160, %161 : vector<2x32xf32>
    %163 = vector.extract_strided_slice %150 {offsets = [0, 64], sizes = [2, 32], strides = [1, 1]} : vector<2x128xf32> to vector<2x32xf32>
    %164 = math.tanh %163 : vector<2x32xf32>
    %165 = vector.extract_strided_slice %150 {offsets = [0, 96], sizes = [2, 32], strides = [1, 1]} : vector<2x128xf32> to vector<2x32xf32>
    %166 = arith.negf %165 : vector<2x32xf32>
    %167 = math.exp %166 : vector<2x32xf32>
    %cst_149 = arith.constant 1.000000e+00 : f32
    %168 = vector.broadcast %cst_149 : f32 to vector<2x32xf32>
    %169 = arith.addf %168, %167 : vector<2x32xf32>
    %170 = arith.divf %168, %169 : vector<2x32xf32>
    %171 = arith.mulf %162, %148 : vector<2x32xf32>
    %172 = arith.mulf %156, %164 : vector<2x32xf32>
    %173 = arith.addf %171, %172 : vector<2x32xf32>
    %174 = math.tanh %173 : vector<2x32xf32>
    %175 = arith.mulf %170, %174 : vector<2x32xf32>
    %cst_150 = arith.constant dense<0.000000e+00> : vector<2x128xf32>
    %176 = tpu.matmul %175, %146, %cst_150 {dimension_numbers = #tpu.dot_dimension_numbers<[1], [0], [0], [1], [0, 0, 1, 1], [], []>} : vector<2x32xf32>, vector<32x128xf32>, vector<2x128xf32> -> vector<2x128xf32>
    %177 = arith.addf %141, %176 : vector<2x128xf32>
    %178 = vector.extract_strided_slice %177 {offsets = [0, 0], sizes = [2, 32], strides = [1, 1]} : vector<2x128xf32> to vector<2x32xf32>
    %179 = arith.negf %178 : vector<2x32xf32>
    %180 = math.exp %179 : vector<2x32xf32>
    %cst_151 = arith.constant 1.000000e+00 : f32
    %181 = vector.broadcast %cst_151 : f32 to vector<2x32xf32>
    %182 = arith.addf %181, %180 : vector<2x32xf32>
    %183 = arith.divf %181, %182 : vector<2x32xf32>
    %184 = vector.extract_strided_slice %177 {offsets = [0, 32], sizes = [2, 32], strides = [1, 1]} : vector<2x128xf32> to vector<2x32xf32>
    %185 = arith.negf %184 : vector<2x32xf32>
    %186 = math.exp %185 : vector<2x32xf32>
    %cst_152 = arith.constant 1.000000e+00 : f32
    %187 = vector.broadcast %cst_152 : f32 to vector<2x32xf32>
    %188 = arith.addf %187, %186 : vector<2x32xf32>
    %189 = arith.divf %187, %188 : vector<2x32xf32>
    %190 = vector.extract_strided_slice %177 {offsets = [0, 64], sizes = [2, 32], strides = [1, 1]} : vector<2x128xf32> to vector<2x32xf32>
    %191 = math.tanh %190 : vector<2x32xf32>
    %192 = vector.extract_strided_slice %177 {offsets = [0, 96], sizes = [2, 32], strides = [1, 1]} : vector<2x128xf32> to vector<2x32xf32>
    %193 = arith.negf %192 : vector<2x32xf32>
    %194 = math.exp %193 : vector<2x32xf32>
    %cst_153 = arith.constant 1.000000e+00 : f32
    %195 = vector.broadcast %cst_153 : f32 to vector<2x32xf32>
    %196 = arith.addf %195, %194 : vector<2x32xf32>
    %197 = arith.divf %195, %196 : vector<2x32xf32>
    %198 = arith.mulf %189, %173 : vector<2x32xf32>
    %199 = arith.mulf %183, %191 : vector<2x32xf32>
    %200 = arith.addf %198, %199 : vector<2x32xf32>
    %201 = math.tanh %200 : vector<2x32xf32>
    %202 = arith.mulf %197, %201 : vector<2x32xf32>
    %cst_154 = arith.constant dense<0.000000e+00> : vector<2x128xf32>
    %203 = tpu.matmul %202, %146, %cst_154 {dimension_numbers = #tpu.dot_dimension_numbers<[1], [0], [0], [1], [0, 0, 1, 1], [], []>} : vector<2x32xf32>, vector<32x128xf32>, vector<2x128xf32> -> vector<2x128xf32>
    %204 = arith.addf %145, %203 : vector<2x128xf32>
    %205 = vector.extract_strided_slice %204 {offsets = [0, 0], sizes = [2, 32], strides = [1, 1]} : vector<2x128xf32> to vector<2x32xf32>
    %206 = arith.negf %205 : vector<2x32xf32>
    %207 = math.exp %206 : vector<2x32xf32>
    %cst_155 = arith.constant 1.000000e+00 : f32
    %208 = vector.broadcast %cst_155 : f32 to vector<2x32xf32>
    %209 = arith.addf %208, %207 : vector<2x32xf32>
    %210 = arith.divf %208, %209 : vector<2x32xf32>
    %211 = vector.extract_strided_slice %204 {offsets = [0, 32], sizes = [2, 32], strides = [1, 1]} : vector<2x128xf32> to vector<2x32xf32>
    %212 = arith.negf %211 : vector<2x32xf32>
    %213 = math.exp %212 : vector<2x32xf32>
    %cst_156 = arith.constant 1.000000e+00 : f32
    %214 = vector.broadcast %cst_156 : f32 to vector<2x32xf32>
    %215 = arith.addf %214, %213 : vector<2x32xf32>
    %216 = arith.divf %214, %215 : vector<2x32xf32>
    %217 = vector.extract_strided_slice %204 {offsets = [0, 64], sizes = [2, 32], strides = [1, 1]} : vector<2x128xf32> to vector<2x32xf32>
    %218 = math.tanh %217 : vector<2x32xf32>
    %219 = vector.extract_strided_slice %204 {offsets = [0, 96], sizes = [2, 32], strides = [1, 1]} : vector<2x128xf32> to vector<2x32xf32>
    %220 = arith.negf %219 : vector<2x32xf32>
    %221 = math.exp %220 : vector<2x32xf32>
    %cst_157 = arith.constant 1.000000e+00 : f32
    %222 = vector.broadcast %cst_157 : f32 to vector<2x32xf32>
    %223 = arith.addf %222, %221 : vector<2x32xf32>
    %224 = arith.divf %222, %223 : vector<2x32xf32>
    %225 = arith.mulf %216, %200 : vector<2x32xf32>
    %226 = arith.mulf %210, %218 : vector<2x32xf32>
    %227 = arith.addf %225, %226 : vector<2x32xf32>
    %228 = math.tanh %227 : vector<2x32xf32>
    %229 = arith.mulf %224, %228 : vector<2x32xf32>
    %c0_158 = arith.constant 0 : index
    %c0_159 = arith.constant 0 : index
    %230 = vector.load %arg6[%c0_158, %c0_159] : memref<32x16xf32, #tpu.memory_space<vmem>>, vector<32x16xf32>
    %cst_160 = arith.constant dense<0.000000e+00> : vector<2x16xf32>
    %231 = tpu.matmul %229, %230, %cst_160 {dimension_numbers = #tpu.dot_dimension_numbers<[1], [0], [0], [1], [0, 0, 1, 1], [], []>} : vector<2x32xf32>, vector<32x16xf32>, vector<2x16xf32> -> vector<2x16xf32>
    %c0_161 = arith.constant 0 : index
    %c0_162 = arith.constant 0 : index
    %232 = vector.load %arg7[%c0_161, %c0_162] : memref<1x16xf32, #tpu.memory_space<vmem>>, vector<1x16xf32>
    %233 = vector.broadcast %232 : vector<1x16xf32> to vector<2x16xf32>
    %234 = arith.addf %231, %233 : vector<2x16xf32>
    %cst_163 = arith.constant 0.000000e+00 : f32
    %235 = vector.broadcast %cst_163 : f32 to vector<2x16xf32>
    %236 = arith.maximumf %234, %235 : vector<2x16xf32>
    %c0_164 = arith.constant 0 : index
    %c0_165 = arith.constant 0 : index
    %237 = vector.load %arg8[%c0_164, %c0_165] : memref<1x16xf32, #tpu.memory_space<vmem>>, vector<1x16xf32>
    %238 = vector.broadcast %237 : vector<1x16xf32> to vector<2x16xf32>
    %239 = arith.mulf %236, %238 : vector<2x16xf32>
    %cst_166 = arith.constant dense<0.000000e+00> : vector<2xf32>
    %240 = vector.multi_reduction <add>, %239, %cst_166 [1] : vector<2x16xf32> to vector<2xf32>
    %241 = vector.shape_cast %240 : vector<2xf32> to vector<2x1xf32>
    %c0_167 = arith.constant 0 : index
    %c0_168 = arith.constant 0 : index
    %242 = vector.load %arg9[%c0_167, %c0_168] : memref<1x1xf32, #tpu.memory_space<vmem>>, vector<1x1xf32>
    %243 = vector.broadcast %242 : vector<1x1xf32> to vector<2x1xf32>
    %244 = arith.addf %241, %243 : vector<2x1xf32>
    %c0_169 = arith.constant 0 : index
    %c0_170 = arith.constant 0 : index
    %245 = vector.load %arg10[%c0_169, %c0_170] : memref<2x1xf32, #tpu.memory_space<vmem>>, vector<2x1xf32>
    tpu.vector_store %arg10[%c0_169, %c0_170], %244 {strides = array<i32>} : memref<2x1xf32, #tpu.memory_space<vmem>>, vector<2x1xf32>,
    return
  }
}

</mosaic_0001>

<llo_original>
// kernel: tpu_custom_call.1
$region0: #{tpu_custom_call.1}
  #allocation0 [shape = 'u32[]', space=smem, size = 0x4, offset = 0x4, fixed_abs, tag = 'smem constant byte address 0x4 - core index']
  #allocation1 [shape = 'u32[144,128]{1,0:T(1,128)}', space=vmem, size = 0x12000, scoped, tag = 'internal scratch']
  #allocation2 [shape = 'f32[1,1]{1,0:T(1,128)S(1)}', space=vmem, size = 0x200, scoped, tag = 'scoped memory for tpu_custom_call.1']
  %s0 = inlined_call_operand.hbm [shape: f32[2,8,16], index: 0, kind: input, shape index: {}]
  %s1 = inlined_call_operand.vmem [shape: f32[3,16,32], index: 1, kind: input, shape index: {}]
  %s2 = inlined_call_operand.vmem [shape: f32[1,32], index: 2, kind: input, shape index: {}]
  %s3 = inlined_call_operand.hbm [shape: f32[32,128], index: 3, kind: input, shape index: {}]
  %s4 = inlined_call_operand.hbm [shape: f32[32,128], index: 4, kind: input, shape index: {}]
  %s5 = inlined_call_operand.vmem [shape: f32[1,128], index: 5, kind: input, shape index: {}]
  %s6 = inlined_call_operand.vmem [shape: f32[32,16], index: 6, kind: input, shape index: {}]
  %s7 = inlined_call_operand.vmem [shape: f32[1,16], index: 7, kind: input, shape index: {}]
  %s8 = inlined_call_operand.vmem [shape: f32[1,16], index: 8, kind: input, shape index: {}]
  %s9 = inlined_call_operand.<no memory space> [shape: f32[1,1], index: 9, kind: input, shape index: {}]
  %s10 = inlined_call_operand.vmem [shape: f32[2,1], index: 10, kind: output, shape index: {}]
  %s11 = sld [smem:[#allocation0]]
  $region62: #{tpu_custom_call.1} parent=0
    _
  %s13 = ssub.s32 1, %s11
  %s14 = scalar_select 0, %s13, %s11
  %v15 = vstv %s9
  %16 = vst [vmem:[#allocation2] sm:$0x1] %v15
  $region1: #{tpu_custom_call.1} parent=0
    #allocation3 [shape = 'u8[8192]{0}', space=vmem, size = 0x2000, scoped, tag = 'input window, operand 0, single buffered']
    #allocation4 [shape = 's32[1]{0}', space=sflag, size = 0x4, scoped, tag = 'scoped memory for tpu_custom_call.1']
    #allocation5 [shape = 'u8[16384]{0}', space=vmem, size = 0x4000, scoped, tag = 'input window, operand 3, single buffered']
    #allocation6 [shape = 's32[1]{0}', space=sflag, size = 0x4, scoped, tag = 'scoped memory for tpu_custom_call.1']
    #allocation7 [shape = 'u8[16384]{0}', space=vmem, size = 0x4000, scoped, tag = 'input window, operand 4, single buffered']
    %17 = vsyncpa [#allocation4], 0
    %18 = vsyncpa [#allocation6], 0
    // Predicated region
    $region2: #{tpu_custom_call.1} parent=1 // pred_check
      _
    $region3: #{tpu_custom_call.1} parent=1 // pred_check_branch
      %20 = sbr.rel (0) target = $region5
    $region4: #{tpu_custom_call.1} parent=1 // pred_region
      %s22 = ssub.s32 256, 256
      %23 = vsyncadd [#allocation4], %s22
      %s24 = sshll.u32 [#allocation3], 4
      %s25 = int_to_ptr.vmem [resolvable:$true] %s24
      %30 = dma.hbm_to_vmem [thread:$0]  %s0, 256, %s25, [#allocation4], 128, 128, 8
    $region5: #{tpu_custom_call.1} parent=1 // pred_fallthru
      _
    // Predicated region
    $region6: #{tpu_custom_call.1} parent=1 // pred_check
      _
    $region7: #{tpu_custom_call.1} parent=1 // pred_check_branch
      %32 = sbr.rel (0) target = $region9
    $region8: #{tpu_custom_call.1} parent=1 // pred_region
      _
    $region9: #{tpu_custom_call.1} parent=1 // pred_fallthru
      _
    // Predicated region
    $region10: #{tpu_custom_call.1} parent=1 // pred_check
      _
    $region11: #{tpu_custom_call.1} parent=1 // pred_check_branch
      %34 = sbr.rel (0) target = $region13
    $region12: #{tpu_custom_call.1} parent=1 // pred_region
      _
    $region13: #{tpu_custom_call.1} parent=1 // pred_fallthru
      _
    // Predicated region
    $region14: #{tpu_custom_call.1} parent=1 // pred_check
      _
    $region15: #{tpu_custom_call.1} parent=1 // pred_check_branch
      %36 = sbr.rel (0) target = $region17
    $region16: #{tpu_custom_call.1} parent=1 // pred_region
      %s38 = ssub.s32 512, 512
      %39 = vsyncadd [#allocation6], %s38
      %s40 = sshll.u32 [#allocation5], 4
      %s41 = int_to_ptr.vmem [resolvable:$true] %s40
      %46 = dma.hbm_to_vmem [thread:$0]  %s3, 512, %s41, [#allocation6], 128, 128, 8
    $region17: #{tpu_custom_call.1} parent=1 // pred_fallthru
      _
    // Predicated region
    $region18: #{tpu_custom_call.1} parent=1 // pred_check
      _
    $region19: #{tpu_custom_call.1} parent=1 // pred_check_branch
      %48 = sbr.rel (0) target = $region21
    $region20: #{tpu_custom_call.1} parent=1 // pred_region
      %s50 = ssub.s32 512, 512
      %51 = vsyncadd [#allocation6], %s50
      %s52 = sshll.u32 [#allocation7], 4
      %s53 = int_to_ptr.vmem [resolvable:$true] %s52
      %58 = dma.hbm_to_vmem [thread:$0]  %s4, 512, %s53, [#allocation6], 128, 128, 8
    $region21: #{tpu_custom_call.1} parent=1 // pred_fallthru
      _
    // Predicated region
    $region22: #{tpu_custom_call.1} parent=1 // pred_check
      _
    $region23: #{tpu_custom_call.1} parent=1 // pred_check_branch
      %60 = sbr.rel (0) target = $region25
    $region24: #{tpu_custom_call.1} parent=1 // pred_region
      _
    $region25: #{tpu_custom_call.1} parent=1 // pred_fallthru
      _
    // Predicated region
    $region26: #{tpu_custom_call.1} parent=1 // pred_check
      _
    $region27: #{tpu_custom_call.1} parent=1 // pred_check_branch
      %62 = sbr.rel (0) target = $region29
    $region28: #{tpu_custom_call.1} parent=1 // pred_region
      _
    $region29: #{tpu_custom_call.1} parent=1 // pred_fallthru
      _
    // Predicated region
    $region30: #{tpu_custom_call.1} parent=1 // pred_check
      _
    $region31: #{tpu_custom_call.1} parent=1 // pred_check_branch
      %64 = sbr.rel (0) target = $region33
    $region32: #{tpu_custom_call.1} parent=1 // pred_region
      _
    $region33: #{tpu_custom_call.1} parent=1 // pred_fallthru
      _
    // Predicated region
    $region34: #{tpu_custom_call.1} parent=1 // pred_check
      _
    $region35: #{tpu_custom_call.1} parent=1 // pred_check_branch
      %66 = sbr.rel (0) target = $region37
    $region36: #{tpu_custom_call.1} parent=1 // pred_region
      _
    $region37: #{tpu_custom_call.1} parent=1 // pred_fallthru
      _
    // Predicated region
    $region38: #{tpu_custom_call.1} parent=1 // pred_check
      _
    $region39: #{tpu_custom_call.1} parent=1 // pred_check_branch
      %68 = sbr.rel (0) target = $region41
    $region40: #{tpu_custom_call.1} parent=1 // pred_region
      _
    $region41: #{tpu_custom_call.1} parent=1 // pred_fallthru
      _
    // Predicated region
    $region42: #{tpu_custom_call.1} parent=1 // pred_check
      _
    $region43: #{tpu_custom_call.1} parent=1 // pred_check_branch
      %70 = sbr.rel (0) target = $region45
    $region44: #{tpu_custom_call.1} parent=1 // pred_region
      %71 = dma.done [#allocation4], 256
    $region45: #{tpu_custom_call.1} parent=1 // pred_fallthru
      _
    // Predicated region
    $region46: #{tpu_custom_call.1} parent=1 // pred_check
      _
    $region47: #{tpu_custom_call.1} parent=1 // pred_check_branch
      %73 = sbr.rel (0) target = $region49
    $region48: #{tpu_custom_call.1} parent=1 // pred_region
      %74 = dma.done [#allocation6], 512
    $region49: #{tpu_custom_call.1} parent=1 // pred_fallthru
      _
    // Predicated region
    $region50: #{tpu_custom_call.1} parent=1 // pred_check
      _
    $region51: #{tpu_custom_call.1} parent=1 // pred_check_branch
      %76 = sbr.rel (0) target = $region53
    $region52: #{tpu_custom_call.1} parent=1 // pred_region
      %77 = dma.done [#allocation6], 512
    $region53: #{tpu_custom_call.1} parent=1 // pred_fallthru
      _
    %v78 = vld [vmem:[%s2] sm:$0x1]
    %v79 = vld [vmem:[#allocation3] sm:$0x1]
    %v80 = vld [vmem:[#allocation3 + $0x8] sm:$0x1]
    %v81 = vld [vmem:[%s1] sm:$0xff]
    %v82 = vld [vmem:[%s1 + $0x8] sm:$0xff]
    %v85 = vrot.slane %v80, 7
    %vm86 = vcmask 1041409
    %v87 = vsel %vm86, %v85, %v79
    %vm88 = vcmask 130048
    %v89 = vsel %vm88, %v87, 0
    %91 = vmatprep.subr.mxu0 0.0
    %92 = vmatpush1.msra.mxu0 0.0
    %93 = vmatprep.subr.mxu0 0.0
    %94 = vmatpush1.msra.mxu0 0.0
    %95 = vmatprep.subr.mxu0 0.0
    %96 = vmatpush1.msra.mxu0 0.0
    %97 = vmatprep.subr.mxu0 0.0
    %98 = vmatpush1.msra.mxu0 0.0
    %99 = vmatprep.subr.mxu0 0.0
    %100 = vmatpush1.msra.mxu0 0.0
    %101 = vmatprep.subr.mxu0 0.0
    %102 = vmatpush1.msra.mxu0 0.0
    %103 = vmatprep.subr.mxu0 0.0
    %104 = vmatpush1.msra.mxu0 0.0
    %105 = vmatprep.subr.mxu0 0.0
    %106 = vmatpush1.msra.mxu0 0.0
    %107 = vmatprep.subr.mxu0 0.0
    %108 = vmatpush1.msra.mxu0 0.0
    %109 = vmatprep.subr.mxu0 0.0
    %110 = vmatpush1.msra.mxu0 0.0
    %111 = vmatprep.subr.mxu0 0.0
    %112 = vmatpush1.msra.mxu0 0.0
    %113 = vmatprep.subr.mxu0 0.0
    %114 = vmatpush1.msra.mxu0 0.0
    %115 = vmatprep.subr.mxu0 0.0
    %116 = vmatpush1.msra.mxu0 0.0
    %117 = vmatprep.subr.mxu0 0.0
    %118 = vmatpush1.msra.mxu0 0.0
    %119 = vmatprep.subr.mxu0 0.0
    %120 = vmatpush1.msra.mxu0 %v82
    %121 = vmatprep.subr.mxu0 0.0
    %122 = vmatpush1.msra.mxu0 %v81
    %123 = vmatprep.subr.mxu0 0.0
    %124 = vmatpush2.msra.mxu0 0.0
    %125 = vmatprep.subr.mxu0 0.0
    %126 = vmatpush2.msra.mxu0 0.0
    %127 = vmatprep.subr.mxu0 0.0
    %128 = vmatpush2.msra.mxu0 0.0
    %129 = vmatprep.subr.mxu0 0.0
    %130 = vmatpush2.msra.mxu0 0.0
    %131 = vmatprep.subr.mxu0 0.0
    %132 = vmatpush2.msra.mxu0 0.0
    %133 = vmatprep.subr.mxu0 0.0
    %134 = vmatpush2.msra.mxu0 0.0
    %135 = vmatprep.subr.mxu0 0.0
    %136 = vmatpush2.msra.mxu0 0.0
    %137 = vmatprep.subr.mxu0 0.0
    %138 = vmatpush2.msra.mxu0 0.0
    %139 = vmatprep.subr.mxu0 0.0
    %140 = vmatpush2.msra.mxu0 0.0
    %141 = vmatprep.subr.mxu0 0.0
    %142 = vmatpush2.msra.mxu0 0.0
    %143 = vmatprep.subr.mxu0 0.0
    %144 = vmatpush2.msra.mxu0 0.0
    %145 = vmatprep.subr.mxu0 0.0
    %146 = vmatpush2.msra.mxu0 0.0
    %147 = vmatprep.subr.mxu0 0.0
    %148 = vmatpush2.msra.mxu0 0.0
    %149 = vmatprep.subr.mxu0 0.0
    %150 = vmatpush2.msra.mxu0 0.0
    %151 = vmatprep.subr.mxu0 0.0
    %152 = vmatpush2.msra.mxu0 0.0
    %153 = vmatprep.subr.mxu0 0.0
    %154 = vmatpush2.msra.mxu0 0.0
    %155 = vmatprep.mubr.f32.mxu0 0.0
    %156 = vmatmul.mubr.f32.gmra.mxu0 %v89
    %v157 = vpop.f32.mrf.mxu0
    %v158 = vadd.f32 0.0, %v157
    %v159 = vpop.f32.mrf.mxu0
    %160 = vdwg.mxu0
    %v162 = vlaneseq
    %v163 = vshrl.u32 %v162, 7
    %v164 = vsub.s32 0, %v163
    %v165 = vrot.slane %v78, %v164
    %v167 = vadd.f32 %v165, %v158
    %v168 = vld [vmem:[#allocation3 + $0x1] sm:$0x1]
    %v169 = vld [vmem:[#allocation3 + $0x9] sm:$0x1]
    %s170 = scalar_lea.vmem %s1, 16
    %v171 = vld [vmem:[%s170] sm:$0xff]
    %v172 = vld [vmem:[%s170 + $0x8] sm:$0xff]
    %v175 = vrot.slane %v169, 7
    %v176 = vsel %vm86, %v175, %v168
    %v177 = vsel %vm88, %v176, 0
    %179 = vmatprep.subr.mxu0 0.0
    %180 = vmatpush1.msra.mxu0 0.0
    %181 = vmatprep.subr.mxu0 0.0
    %182 = vmatpush1.msra.mxu0 0.0
    %183 = vmatprep.subr.mxu0 0.0
    %184 = vmatpush1.msra.mxu0 0.0
    %185 = vmatprep.subr.mxu0 0.0
    %186 = vmatpush1.msra.mxu0 0.0
    %187 = vmatprep.subr.mxu0 0.0
    %188 = vmatpush1.msra.mxu0 0.0
    %189 = vmatprep.subr.mxu0 0.0
    %190 = vmatpush1.msra.mxu0 0.0
    %191 = vmatprep.subr.mxu0 0.0
    %192 = vmatpush1.msra.mxu0 0.0
    %193 = vmatprep.subr.mxu0 0.0
    %194 = vmatpush1.msra.mxu0 0.0
    %195 = vmatprep.subr.mxu0 0.0
    %196 = vmatpush1.msra.mxu0 0.0
    %197 = vmatprep.subr.mxu0 0.0
    %198 = vmatpush1.msra.mxu0 0.0
    %199 = vmatprep.subr.mxu0 0.0
    %200 = vmatpush1.msra.mxu0 0.0
    %201 = vmatprep.subr.mxu0 0.0
    %202 = vmatpush1.msra.mxu0 0.0
    %203 = vmatprep.subr.mxu0 0.0
    %204 = vmatpush1.msra.mxu0 0.0
    %205 = vmatprep.subr.mxu0 0.0
    %206 = vmatpush1.msra.mxu0 0.0
    %207 = vmatprep.subr.mxu0 0.0
    %208 = vmatpush1.msra.mxu0 %v172
    %209 = vmatprep.subr.mxu0 0.0
    %210 = vmatpush1.msra.mxu0 %v171
    %211 = vmatprep.subr.mxu0 0.0
    %212 = vmatpush2.msra.mxu0 0.0
    %213 = vmatprep.subr.mxu0 0.0
    %214 = vmatpush2.msra.mxu0 0.0
    %215 = vmatprep.subr.mxu0 0.0
    %216 = vmatpush2.msra.mxu0 0.0
    %217 = vmatprep.subr.mxu0 0.0
    %218 = vmatpush2.msra.mxu0 0.0
    %219 = vmatprep.subr.mxu0 0.0
    %220 = vmatpush2.msra.mxu0 0.0
    %221 = vmatprep.subr.mxu0 0.0
    %222 = vmatpush2.msra.mxu0 0.0
    %223 = vmatprep.subr.mxu0 0.0
    %224 = vmatpush2.msra.mxu0 0.0
    %225 = vmatprep.subr.mxu0 0.0
    %226 = vmatpush2.msra.mxu0 0.0
    %227 = vmatprep.subr.mxu0 0.0
    %228 = vmatpush2.msra.mxu0 0.0
    %229 = vmatprep.subr.mxu0 0.0
    %230 = vmatpush2.msra.mxu0 0.0
    %231 = vmatprep.subr.mxu0 0.0
    %232 = vmatpush2.msra.mxu0 0.0
    %233 = vmatprep.subr.mxu0 0.0
    %234 = vmatpush2.msra.mxu0 0.0
    %235 = vmatprep.subr.mxu0 0.0
    %236 = vmatpush2.msra.mxu0 0.0
    %237 = vmatprep.subr.mxu0 0.0
    %238 = vmatpush2.msra.mxu0 0.0
    %239 = vmatprep.subr.mxu0 0.0
    %240 = vmatpush2.msra.mxu0 0.0
    %241 = vmatprep.subr.mxu0 0.0
    %242 = vmatpush2.msra.mxu0 0.0
    %243 = vmatprep.mubr.f32.mxu0 0.0
    %244 = vmatmul.mubr.f32.gmra.mxu0 %v177
    %v245 = vpop.f32.mrf.mxu0
    %v246 = vadd.f32 0.0, %v245
    %v247 = vpop.f32.mrf.mxu0
    %248 = vdwg.mxu0
    %v249 = vadd.f32 %v167, %v246
    %v250 = vld [vmem:[#allocation3 + $0x2] sm:$0x1]
    %v251 = vld [vmem:[#allocation3 + $0xa] sm:$0x1]
    %s252 = scalar_lea.vmem %s1, 32
    %v253 = vld [vmem:[%s252] sm:$0xff]
    %v254 = vld [vmem:[%s252 + $0x8] sm:$0xff]
    %v257 = vrot.slane %v251, 7
    %v258 = vsel %vm86, %v257, %v250
    %v259 = vsel %vm88, %v258, 0
    %261 = vmatprep.subr.mxu0 0.0
    %262 = vmatpush1.msra.mxu0 0.0
    %263 = vmatprep.subr.mxu0 0.0
    %264 = vmatpush1.msra.mxu0 0.0
    %265 = vmatprep.subr.mxu0 0.0
    %266 = vmatpush1.msra.mxu0 0.0
    %267 = vmatprep.subr.mxu0 0.0
    %268 = vmatpush1.msra.mxu0 0.0
    %269 = vmatprep.subr.mxu0 0.0
    %270 = vmatpush1.msra.mxu0 0.0
    %271 = vmatprep.subr.mxu0 0.0
    %272 = vmatpush1.msra.mxu0 0.0
    %273 = vmatprep.subr.mxu0 0.0
    %274 = vmatpush1.msra.mxu0 0.0
    %275 = vmatprep.subr.mxu0 0.0
    %276 = vmatpush1.msra.mxu0 0.0
    %277 = vmatprep.subr.mxu0 0.0
    %278 = vmatpush1.msra.mxu0 0.0
    %279 = vmatprep.subr.mxu0 0.0
    %280 = vmatpush1.msra.mxu0 0.0
    %281 = vmatprep.subr.mxu0 0.0
    %282 = vmatpush1.msra.mxu0 0.0
    %283 = vmatprep.subr.mxu0 0.0
    %284 = vmatpush1.msra.mxu0 0.0
    %285 = vmatprep.subr.mxu0 0.0
    %286 = vmatpush1.msra.mxu0 0.0
    %287 = vmatprep.subr.mxu0 0.0
    %288 = vmatpush1.msra.mxu0 0.0
    %289 = vmatprep.subr.mxu0 0.0
    %290 = vmatpush1.msra.mxu0 %v254
    %291 = vmatprep.subr.mxu0 0.0
    %292 = vmatpush1.msra.mxu0 %v253
    %293 = vmatprep.subr.mxu0 0.0
    %294 = vmatpush2.msra.mxu0 0.0
    %295 = vmatprep.subr.mxu0 0.0
    %296 = vmatpush2.msra.mxu0 0.0
    %297 = vmatprep.subr.mxu0 0.0
    %298 = vmatpush2.msra.mxu0 0.0
    %299 = vmatprep.subr.mxu0 0.0
    %300 = vmatpush2.msra.mxu0 0.0
    %301 = vmatprep.subr.mxu0 0.0
    %302 = vmatpush2.msra.mxu0 0.0
    %303 = vmatprep.subr.mxu0 0.0
    %304 = vmatpush2.msra.mxu0 0.0
    %305 = vmatprep.subr.mxu0 0.0
    %306 = vmatpush2.msra.mxu0 0.0
    %307 = vmatprep.subr.mxu0 0.0
    %308 = vmatpush2.msra.mxu0 0.0
    %309 = vmatprep.subr.mxu0 0.0
    %310 = vmatpush2.msra.mxu0 0.0
    %311 = vmatprep.subr.mxu0 0.0
    %312 = vmatpush2.msra.mxu0 0.0
    %313 = vmatprep.subr.mxu0 0.0
    %314 = vmatpush2.msra.mxu0 0.0
    %315 = vmatprep.subr.mxu0 0.0
    %316 = vmatpush2.msra.mxu0 0.0
    %317 = vmatprep.subr.mxu0 0.0
    %318 = vmatpush2.msra.mxu0 0.0
    %319 = vmatprep.subr.mxu0 0.0
    %320 = vmatpush2.msra.mxu0 0.0
    %321 = vmatprep.subr.mxu0 0.0
    %322 = vmatpush2.msra.mxu0 0.0
    %323 = vmatprep.subr.mxu0 0.0
    %324 = vmatpush2.msra.mxu0 0.0
    %325 = vmatprep.mubr.f32.mxu0 0.0
    %326 = vmatmul.mubr.f32.gmra.mxu0 %v259
    %v327 = vpop.f32.mrf.mxu0
    %v328 = vadd.f32 0.0, %v327
    %v329 = vpop.f32.mrf.mxu0
    %330 = vdwg.mxu0
    %v331 = vadd.f32 %v249, %v328
    %v332 = vmax.f32 %v331, 0.0
    %333 = vmatprep.subr.mxu0 0.0
    %334 = vmatpush1.msra.mxu0 0.0
    %335 = vmatprep.subr.mxu0 0.0
    %336 = vmatpush1.msra.mxu0 0.0
    %337 = vmatprep.subr.mxu0 0.0
    %338 = vmatpush1.msra.mxu0 0.0
    %339 = vmatprep.subr.mxu0 0.0
    %340 = vmatpush1.msra.mxu0 0.0
    %341 = vmatprep.subr.mxu0 0.0
    %342 = vmatpush1.msra.mxu0 0.0
    %343 = vmatprep.subr.mxu0 0.0
    %344 = vmatpush1.msra.mxu0 0.0
    %345 = vmatprep.subr.mxu0 0.0
    %346 = vmatpush1.msra.mxu0 0.0
    %347 = vmatprep.subr.mxu0 0.0
    %348 = vmatpush1.msra.mxu0 0.0
    %349 = vmatprep.subr.mxu0 0.0
    %350 = vmatpush1.msra.mxu0 0.0
    %351 = vmatprep.subr.mxu0 0.0
    %352 = vmatpush1.msra.mxu0 0.0
    %353 = vmatprep.subr.mxu0 0.0
    %354 = vmatpush1.msra.mxu0 0.0
    %355 = vmatprep.subr.mxu0 0.0
    %356 = vmatpush1.msra.mxu0 0.0
    %357 = vmatprep.subr.mxu0 0.0
    %358 = vmatpush1.msra.mxu0 0.0
    %359 = vmatprep.subr.mxu0 0.0
    %360 = vmatpush1.msra.mxu0 0.0
    %361 = vmatprep.subr.mxu0 0.0
    %362 = vmatpush1.msra.mxu0 %v82
    %363 = vmatprep.subr.mxu0 0.0
    %364 = vmatpush1.msra.mxu0 %v81
    %365 = vmatprep.subr.mxu0 0.0
    %366 = vmatpush2.msra.mxu0 0.0
    %367 = vmatprep.subr.mxu0 0.0
    %368 = vmatpush2.msra.mxu0 0.0
    %369 = vmatprep.subr.mxu0 0.0
    %370 = vmatpush2.msra.mxu0 0.0
    %371 = vmatprep.subr.mxu0 0.0
    %372 = vmatpush2.msra.mxu0 0.0
    %373 = vmatprep.subr.mxu0 0.0
    %374 = vmatpush2.msra.mxu0 0.0
    %375 = vmatprep.subr.mxu0 0.0
    %376 = vmatpush2.msra.mxu0 0.0
    %377 = vmatprep.subr.mxu0 0.0
    %378 = vmatpush2.msra.mxu0 0.0
    %379 = vmatprep.subr.mxu0 0.0
    %380 = vmatpush2.msra.mxu0 0.0
    %381 = vmatprep.subr.mxu0 0.0
    %382 = vmatpush2.msra.mxu0 0.0
    %383 = vmatprep.subr.mxu0 0.0
    %384 = vmatpush2.msra.mxu0 0.0
    %385 = vmatprep.subr.mxu0 0.0
    %386 = vmatpush2.msra.mxu0 0.0
    %387 = vmatprep.subr.mxu0 0.0
    %388 = vmatpush2.msra.mxu0 0.0
    %389 = vmatprep.subr.mxu0 0.0
    %390 = vmatpush2.msra.mxu0 0.0
    %391 = vmatprep.subr.mxu0 0.0
    %392 = vmatpush2.msra.mxu0 0.0
    %393 = vmatprep.subr.mxu0 0.0
    %394 = vmatpush2.msra.mxu0 0.0
    %395 = vmatprep.subr.mxu0 0.0
    %396 = vmatpush2.msra.mxu0 0.0
    %397 = vmatprep.mubr.f32.mxu0 0.0
    %398 = vmatmul.mubr.f32.gmra.mxu0 %v177
    %v399 = vpop.f32.mrf.mxu0
    %v400 = vadd.f32 0.0, %v399
    %v401 = vpop.f32.mrf.mxu0
    %402 = vdwg.mxu0
    %v403 = vadd.f32 %v165, %v400
    %404 = vmatprep.subr.mxu0 0.0
    %405 = vmatpush1.msra.mxu0 0.0
    %406 = vmatprep.subr.mxu0 0.0
    %407 = vmatpush1.msra.mxu0 0.0
    %408 = vmatprep.subr.mxu0 0.0
    %409 = vmatpush1.msra.mxu0 0.0
    %410 = vmatprep.subr.mxu0 0.0
    %411 = vmatpush1.msra.mxu0 0.0
    %412 = vmatprep.subr.mxu0 0.0
    %413 = vmatpush1.msra.mxu0 0.0
    %414 = vmatprep.subr.mxu0 0.0
    %415 = vmatpush1.msra.mxu0 0.0
    %416 = vmatprep.subr.mxu0 0.0
    %417 = vmatpush1.msra.mxu0 0.0
    %418 = vmatprep.subr.mxu0 0.0
    %419 = vmatpush1.msra.mxu0 0.0
    %420 = vmatprep.subr.mxu0 0.0
    %421 = vmatpush1.msra.mxu0 0.0
    %422 = vmatprep.subr.mxu0 0.0
    %423 = vmatpush1.msra.mxu0 0.0
    %424 = vmatprep.subr.mxu0 0.0
    %425 = vmatpush1.msra.mxu0 0.0
    %426 = vmatprep.subr.mxu0 0.0
    %427 = vmatpush1.msra.mxu0 0.0
    %428 = vmatprep.subr.mxu0 0.0
    %429 = vmatpush1.msra.mxu0 0.0
    %430 = vmatprep.subr.mxu0 0.0
    %431 = vmatpush1.msra.mxu0 0.0
    %432 = vmatprep.subr.mxu0 0.0
    %433 = vmatpush1.msra.mxu0 %v172
    %434 = vmatprep.subr.mxu0 0.0
    %435 = vmatpush1.msra.mxu0 %v171
    %436 = vmatprep.subr.mxu0 0.0
    %437 = vmatpush2.msra.mxu0 0.0
    %438 = vmatprep.subr.mxu0 0.0
    %439 = vmatpush2.msra.mxu0 0.0
    %440 = vmatprep.subr.mxu0 0.0
    %441 = vmatpush2.msra.mxu0 0.0
    %442 = vmatprep.subr.mxu0 0.0
    %443 = vmatpush2.msra.mxu0 0.0
    %444 = vmatprep.subr.mxu0 0.0
    %445 = vmatpush2.msra.mxu0 0.0
    %446 = vmatprep.subr.mxu0 0.0
    %447 = vmatpush2.msra.mxu0 0.0
    %448 = vmatprep.subr.mxu0 0.0
    %449 = vmatpush2.msra.mxu0 0.0
    %450 = vmatprep.subr.mxu0 0.0
    %451 = vmatpush2.msra.mxu0 0.0
    %452 = vmatprep.subr.mxu0 0.0
    %453 = vmatpush2.msra.mxu0 0.0
    %454 = vmatprep.subr.mxu0 0.0
    %455 = vmatpush2.msra.mxu0 0.0
    %456 = vmatprep.subr.mxu0 0.0
    %457 = vmatpush2.msra.mxu0 0.0
    %458 = vmatprep.subr.mxu0 0.0
    %459 = vmatpush2.msra.mxu0 0.0
    %460 = vmatprep.subr.mxu0 0.0
    %461 = vmatpush2.msra.mxu0 0.0
    %462 = vmatprep.subr.mxu0 0.0
    %463 = vmatpush2.msra.mxu0 0.0
    %464 = vmatprep.subr.mxu0 0.0
    %465 = vmatpush2.msra.mxu0 0.0
    %466 = vmatprep.subr.mxu0 0.0
    %467 = vmatpush2.msra.mxu0 0.0
    %468 = vmatprep.mubr.f32.mxu0 0.0
    %469 = vmatmul.mubr.f32.gmra.mxu0 %v259
    %v470 = vpop.f32.mrf.mxu0
    %v471 = vadd.f32 0.0, %v470
    %v472 = vpop.f32.mrf.mxu0
    %473 = vdwg.mxu0
    %v474 = vadd.f32 %v403, %v471
    %v475 = vld [vmem:[#allocation3 + $0x3] sm:$0x1]
    %v476 = vld [vmem:[#allocation3 + $0xb] sm:$0x1]
    %v479 = vrot.slane %v476, 7
    %v480 = vsel %vm86, %v479, %v475
    %v481 = vsel %vm88, %v480, 0
    %483 = vmatprep.subr.mxu0 0.0
    %484 = vmatpush1.msra.mxu0 0.0
    %485 = vmatprep.subr.mxu0 0.0
    %486 = vmatpush1.msra.mxu0 0.0
    %487 = vmatprep.subr.mxu0 0.0
    %488 = vmatpush1.msra.mxu0 0.0
    %489 = vmatprep.subr.mxu0 0.0
    %490 = vmatpush1.msra.mxu0 0.0
    %491 = vmatprep.subr.mxu0 0.0
    %492 = vmatpush1.msra.mxu0 0.0
    %493 = vmatprep.subr.mxu0 0.0
    %494 = vmatpush1.msra.mxu0 0.0
    %495 = vmatprep.subr.mxu0 0.0
    %496 = vmatpush1.msra.mxu0 0.0
    %497 = vmatprep.subr.mxu0 0.0
    %498 = vmatpush1.msra.mxu0 0.0
    %499 = vmatprep.subr.mxu0 0.0
    %500 = vmatpush1.msra.mxu0 0.0
    %501 = vmatprep.subr.mxu0 0.0
    %502 = vmatpush1.msra.mxu0 0.0
    %503 = vmatprep.subr.mxu0 0.0
    %504 = vmatpush1.msra.mxu0 0.0
    %505 = vmatprep.subr.mxu0 0.0
    %506 = vmatpush1.msra.mxu0 0.0
    %507 = vmatprep.subr.mxu0 0.0
    %508 = vmatpush1.msra.mxu0 0.0
    %509 = vmatprep.subr.mxu0 0.0
    %510 = vmatpush1.msra.mxu0 0.0
    %511 = vmatprep.subr.mxu0 0.0
    %512 = vmatpush1.msra.mxu0 %v254
    %513 = vmatprep.subr.mxu0 0.0
    %514 = vmatpush1.msra.mxu0 %v253
    %515 = vmatprep.subr.mxu0 0.0
    %516 = vmatpush2.msra.mxu0 0.0
    %517 = vmatprep.subr.mxu0 0.0
    %518 = vmatpush2.msra.mxu0 0.0
    %519 = vmatprep.subr.mxu0 0.0
    %520 = vmatpush2.msra.mxu0 0.0
    %521 = vmatprep.subr.mxu0 0.0
    %522 = vmatpush2.msra.mxu0 0.0
    %523 = vmatprep.subr.mxu0 0.0
    %524 = vmatpush2.msra.mxu0 0.0
    %525 = vmatprep.subr.mxu0 0.0
    %526 = vmatpush2.msra.mxu0 0.0
    %527 = vmatprep.subr.mxu0 0.0
    %528 = vmatpush2.msra.mxu0 0.0
    %529 = vmatprep.subr.mxu0 0.0
    %530 = vmatpush2.msra.mxu0 0.0
    %531 = vmatprep.subr.mxu0 0.0
    %532 = vmatpush2.msra.mxu0 0.0
    %533 = vmatprep.subr.mxu0 0.0
    %534 = vmatpush2.msra.mxu0 0.0
    %535 = vmatprep.subr.mxu0 0.0
    %536 = vmatpush2.msra.mxu0 0.0
    %537 = vmatprep.subr.mxu0 0.0
    %538 = vmatpush2.msra.mxu0 0.0
    %539 = vmatprep.subr.mxu0 0.0
    %540 = vmatpush2.msra.mxu0 0.0
    %541 = vmatprep.subr.mxu0 0.0
    %542 = vmatpush2.msra.mxu0 0.0
    %543 = vmatprep.subr.mxu0 0.0
    %544 = vmatpush2.msra.mxu0 0.0
    %545 = vmatprep.subr.mxu0 0.0
    %546 = vmatpush2.msra.mxu0 0.0
    %547 = vmatprep.mubr.f32.mxu0 0.0
    %548 = vmatmul.mubr.f32.gmra.mxu0 %v481
    %v549 = vpop.f32.mrf.mxu0
    %v550 = vadd.f32 0.0, %v549
    %v551 = vpop.f32.mrf.mxu0
    %552 = vdwg.mxu0
    %v553 = vadd.f32 %v474, %v550
    %v554 = vmax.f32 %v553, 0.0
    %555 = vmatprep.subr.mxu0 0.0
    %556 = vmatpush1.msra.mxu0 0.0
    %557 = vmatprep.subr.mxu0 0.0
    %558 = vmatpush1.msra.mxu0 0.0
    %559 = vmatprep.subr.mxu0 0.0
    %560 = vmatpush1.msra.mxu0 0.0
    %561 = vmatprep.subr.mxu0 0.0
    %562 = vmatpush1.msra.mxu0 0.0
    %563 = vmatprep.subr.mxu0 0.0
    %564 = vmatpush1.msra.mxu0 0.0
    %565 = vmatprep.subr.mxu0 0.0
    %566 = vmatpush1.msra.mxu0 0.0
    %567 = vmatprep.subr.mxu0 0.0
    %568 = vmatpush1.msra.mxu0 0.0
    %569 = vmatprep.subr.mxu0 0.0
    %570 = vmatpush1.msra.mxu0 0.0
    %571 = vmatprep.subr.mxu0 0.0
    %572 = vmatpush1.msra.mxu0 0.0
    %573 = vmatprep.subr.mxu0 0.0
    %574 = vmatpush1.msra.mxu0 0.0
    %575 = vmatprep.subr.mxu0 0.0
    %576 = vmatpush1.msra.mxu0 0.0
    %577 = vmatprep.subr.mxu0 0.0
    %578 = vmatpush1.msra.mxu0 0.0
    %579 = vmatprep.subr.mxu0 0.0
    %580 = vmatpush1.msra.mxu0 0.0
    %581 = vmatprep.subr.mxu0 0.0
    %582 = vmatpush1.msra.mxu0 0.0
    %583 = vmatprep.subr.mxu0 0.0
    %584 = vmatpush1.msra.mxu0 %v82
    %585 = vmatprep.subr.mxu0 0.0
    %586 = vmatpush1.msra.mxu0 %v81
    %587 = vmatprep.subr.mxu0 0.0
    %588 = vmatpush2.msra.mxu0 0.0
    %589 = vmatprep.subr.mxu0 0.0
    %590 = vmatpush2.msra.mxu0 0.0
    %591 = vmatprep.subr.mxu0 0.0
    %592 = vmatpush2.msra.mxu0 0.0
    %593 = vmatprep.subr.mxu0 0.0
    %594 = vmatpush2.msra.mxu0 0.0
    %595 = vmatprep.subr.mxu0 0.0
    %596 = vmatpush2.msra.mxu0 0.0
    %597 = vmatprep.subr.mxu0 0.0
    %598 = vmatpush2.msra.mxu0 0.0
    %599 = vmatprep.subr.mxu0 0.0
    %600 = vmatpush2.msra.mxu0 0.0
    %601 = vmatprep.subr.mxu0 0.0
    %602 = vmatpush2.msra.mxu0 0.0
    %603 = vmatprep.subr.mxu0 0.0
    %604 = vmatpush2.msra.mxu0 0.0
    %605 = vmatprep.subr.mxu0 0.0
    %606 = vmatpush2.msra.mxu0 0.0
    %607 = vmatprep.subr.mxu0 0.0
    %608 = vmatpush2.msra.mxu0 0.0
    %609 = vmatprep.subr.mxu0 0.0
    %610 = vmatpush2.msra.mxu0 0.0
    %611 = vmatprep.subr.mxu0 0.0
    %612 = vmatpush2.msra.mxu0 0.0
    %613 = vmatprep.subr.mxu0 0.0
    %614 = vmatpush2.msra.mxu0 0.0
    %615 = vmatprep.subr.mxu0 0.0
    %616 = vmatpush2.msra.mxu0 0.0
    %617 = vmatprep.subr.mxu0 0.0
    %618 = vmatpush2.msra.mxu0 0.0
    %619 = vmatprep.mubr.f32.mxu0 0.0
    %620 = vmatmul.mubr.f32.gmra.mxu0 %v259
    %v621 = vpop.f32.mrf.mxu0
    %v622 = vadd.f32 0.0, %v621
    %v623 = vpop.f32.mrf.mxu0
    %624 = vdwg.mxu0
    %v625 = vadd.f32 %v165, %v622
    %626 = vmatprep.subr.mxu0 0.0
    %627 = vmatpush1.msra.mxu0 0.0
    %628 = vmatprep.subr.mxu0 0.0
    %629 = vmatpush1.msra.mxu0 0.0
    %630 = vmatprep.subr.mxu0 0.0
    %631 = vmatpush1.msra.mxu0 0.0
    %632 = vmatprep.subr.mxu0 0.0
    %633 = vmatpush1.msra.mxu0 0.0
    %634 = vmatprep.subr.mxu0 0.0
    %635 = vmatpush1.msra.mxu0 0.0
    %636 = vmatprep.subr.mxu0 0.0
    %637 = vmatpush1.msra.mxu0 0.0
    %638 = vmatprep.subr.mxu0 0.0
    %639 = vmatpush1.msra.mxu0 0.0
    %640 = vmatprep.subr.mxu0 0.0
    %641 = vmatpush1.msra.mxu0 0.0
    %642 = vmatprep.subr.mxu0 0.0
    %643 = vmatpush1.msra.mxu0 0.0
    %644 = vmatprep.subr.mxu0 0.0
    %645 = vmatpush1.msra.mxu0 0.0
    %646 = vmatprep.subr.mxu0 0.0
    %647 = vmatpush1.msra.mxu0 0.0
    %648 = vmatprep.subr.mxu0 0.0
    %649 = vmatpush1.msra.mxu0 0.0
    %650 = vmatprep.subr.mxu0 0.0
    %651 = vmatpush1.msra.mxu0 0.0
    %652 = vmatprep.subr.mxu0 0.0
    %653 = vmatpush1.msra.mxu0 0.0
    %654 = vmatprep.subr.mxu0 0.0
    %655 = vmatpush1.msra.mxu0 %v172
    %656 = vmatprep.subr.mxu0 0.0
    %657 = vmatpush1.msra.mxu0 %v171
    %658 = vmatprep.subr.mxu0 0.0
    %659 = vmatpush2.msra.mxu0 0.0
    %660 = vmatprep.subr.mxu0 0.0
    %661 = vmatpush2.msra.mxu0 0.0
    %662 = vmatprep.subr.mxu0 0.0
    %663 = vmatpush2.msra.mxu0 0.0
    %664 = vmatprep.subr.mxu0 0.0
    %665 = vmatpush2.msra.mxu0 0.0
    %666 = vmatprep.subr.mxu0 0.0
    %667 = vmatpush2.msra.mxu0 0.0
    %668 = vmatprep.subr.mxu0 0.0
    %669 = vmatpush2.msra.mxu0 0.0
    %670 = vmatprep.subr.mxu0 0.0
    %671 = vmatpush2.msra.mxu0 0.0
    %672 = vmatprep.subr.mxu0 0.0
    %673 = vmatpush2.msra.mxu0 0.0
    %674 = vmatprep.subr.mxu0 0.0
    %675 = vmatpush2.msra.mxu0 0.0
    %676 = vmatprep.subr.mxu0 0.0
    %677 = vmatpush2.msra.mxu0 0.0
    %678 = vmatprep.subr.mxu0 0.0
    %679 = vmatpush2.msra.mxu0 0.0
    %680 = vmatprep.subr.mxu0 0.0
    %681 = vmatpush2.msra.mxu0 0.0
    %682 = vmatprep.subr.mxu0 0.0
    %683 = vmatpush2.msra.mxu0 0.0
    %684 = vmatprep.subr.mxu0 0.0
    %685 = vmatpush2.msra.mxu0 0.0
    %686 = vmatprep.subr.mxu0 0.0
    %687 = vmatpush2.msra.mxu0 0.0
    %688 = vmatprep.subr.mxu0 0.0
    %689 = vmatpush2.msra.mxu0 0.0
    %690 = vmatprep.mubr.f32.mxu0 0.0
    %691 = vmatmul.mubr.f32.gmra.mxu0 %v481
    %v692 = vpop.f32.mrf.mxu0
    %v693 = vadd.f32 0.0, %v692
    %v694 = vpop.f32.mrf.mxu0
    %695 = vdwg.mxu0
    %v696 = vadd.f32 %v625, %v693
    %v697 = vld [vmem:[#allocation3 + $0x4] sm:$0x1]
    %v698 = vld [vmem:[#allocation3 + $0xc] sm:$0x1]
    %v701 = vrot.slane %v698, 7
    %v702 = vsel %vm86, %v701, %v697
    %v703 = vsel %vm88, %v702, 0
    %705 = vmatprep.subr.mxu0 0.0
    %706 = vmatpush1.msra.mxu0 0.0
    %707 = vmatprep.subr.mxu0 0.0
    %708 = vmatpush1.msra.mxu0 0.0
    %709 = vmatprep.subr.mxu0 0.0
    %710 = vmatpush1.msra.mxu0 0.0
    %711 = vmatprep.subr.mxu0 0.0
    %712 = vmatpush1.msra.mxu0 0.0
    %713 = vmatprep.subr.mxu0 0.0
    %714 = vmatpush1.msra.mxu0 0.0
    %715 = vmatprep.subr.mxu0 0.0
    %716 = vmatpush1.msra.mxu0 0.0
    %717 = vmatprep.subr.mxu0 0.0
    %718 = vmatpush1.msra.mxu0 0.0
    %719 = vmatprep.subr.mxu0 0.0
    %720 = vmatpush1.msra.mxu0 0.0
    %721 = vmatprep.subr.mxu0 0.0
    %722 = vmatpush1.msra.mxu0 0.0
    %723 = vmatprep.subr.mxu0 0.0
    %724 = vmatpush1.msra.mxu0 0.0
    %725 = vmatprep.subr.mxu0 0.0
    %726 = vmatpush1.msra.mxu0 0.0
    %727 = vmatprep.subr.mxu0 0.0
    %728 = vmatpush1.msra.mxu0 0.0
    %729 = vmatprep.subr.mxu0 0.0
    %730 = vmatpush1.msra.mxu0 0.0
    %731 = vmatprep.subr.mxu0 0.0
    %732 = vmatpush1.msra.mxu0 0.0
    %733 = vmatprep.subr.mxu0 0.0
    %734 = vmatpush1.msra.mxu0 %v254
    %735 = vmatprep.subr.mxu0 0.0
    %736 = vmatpush1.msra.mxu0 %v253
    %737 = vmatprep.subr.mxu0 0.0
    %738 = vmatpush2.msra.mxu0 0.0
    %739 = vmatprep.subr.mxu0 0.0
    %740 = vmatpush2.msra.mxu0 0.0
    %741 = vmatprep.subr.mxu0 0.0
    %742 = vmatpush2.msra.mxu0 0.0
    %743 = vmatprep.subr.mxu0 0.0
    %744 = vmatpush2.msra.mxu0 0.0
    %745 = vmatprep.subr.mxu0 0.0
    %746 = vmatpush2.msra.mxu0 0.0
    %747 = vmatprep.subr.mxu0 0.0
    %748 = vmatpush2.msra.mxu0 0.0
    %749 = vmatprep.subr.mxu0 0.0
    %750 = vmatpush2.msra.mxu0 0.0
    %751 = vmatprep.subr.mxu0 0.0
    %752 = vmatpush2.msra.mxu0 0.0
    %753 = vmatprep.subr.mxu0 0.0
    %754 = vmatpush2.msra.mxu0 0.0
    %755 = vmatprep.subr.mxu0 0.0
    %756 = vmatpush2.msra.mxu0 0.0
    %757 = vmatprep.subr.mxu0 0.0
    %758 = vmatpush2.msra.mxu0 0.0
    %759 = vmatprep.subr.mxu0 0.0
    %760 = vmatpush2.msra.mxu0 0.0
    %761 = vmatprep.subr.mxu0 0.0
    %762 = vmatpush2.msra.mxu0 0.0
    %763 = vmatprep.subr.mxu0 0.0
    %764 = vmatpush2.msra.mxu0 0.0
    %765 = vmatprep.subr.mxu0 0.0
    %766 = vmatpush2.msra.mxu0 0.0
    %767 = vmatprep.subr.mxu0 0.0
    %768 = vmatpush2.msra.mxu0 0.0
    %769 = vmatprep.mubr.f32.mxu0 0.0
    %770 = vmatmul.mubr.f32.gmra.mxu0 %v703
    %v771 = vpop.f32.mrf.mxu0
    %v772 = vadd.f32 0.0, %v771
    %v773 = vpop.f32.mrf.mxu0
    %774 = vdwg.mxu0
    %v775 = vadd.f32 %v696, %v772
    %v776 = vmax.f32 %v775, 0.0
    %777 = vmatprep.subr.mxu0 0.0
    %778 = vmatpush1.msra.mxu0 0.0
    %779 = vmatprep.subr.mxu0 0.0
    %780 = vmatpush1.msra.mxu0 0.0
    %781 = vmatprep.subr.mxu0 0.0
    %782 = vmatpush1.msra.mxu0 0.0
    %783 = vmatprep.subr.mxu0 0.0
    %784 = vmatpush1.msra.mxu0 0.0
    %785 = vmatprep.subr.mxu0 0.0
    %786 = vmatpush1.msra.mxu0 0.0
    %787 = vmatprep.subr.mxu0 0.0
    %788 = vmatpush1.msra.mxu0 0.0
    %789 = vmatprep.subr.mxu0 0.0
    %790 = vmatpush1.msra.mxu0 0.0
    %791 = vmatprep.subr.mxu0 0.0
    %792 = vmatpush1.msra.mxu0 0.0
    %793 = vmatprep.subr.mxu0 0.0
    %794 = vmatpush1.msra.mxu0 0.0
    %795 = vmatprep.subr.mxu0 0.0
    %796 = vmatpush1.msra.mxu0 0.0
    %797 = vmatprep.subr.mxu0 0.0
    %798 = vmatpush1.msra.mxu0 0.0
    %799 = vmatprep.subr.mxu0 0.0
    %800 = vmatpush1.msra.mxu0 0.0
    %801 = vmatprep.subr.mxu0 0.0
    %802 = vmatpush1.msra.mxu0 0.0
    %803 = vmatprep.subr.mxu0 0.0
    %804 = vmatpush1.msra.mxu0 0.0
    %805 = vmatprep.subr.mxu0 0.0
    %806 = vmatpush1.msra.mxu0 %v82
    %807 = vmatprep.subr.mxu0 0.0
    %808 = vmatpush1.msra.mxu0 %v81
    %809 = vmatprep.subr.mxu0 0.0
    %810 = vmatpush2.msra.mxu0 0.0
    %811 = vmatprep.subr.mxu0 0.0
    %812 = vmatpush2.msra.mxu0 0.0
    %813 = vmatprep.subr.mxu0 0.0
    %814 = vmatpush2.msra.mxu0 0.0
    %815 = vmatprep.subr.mxu0 0.0
    %816 = vmatpush2.msra.mxu0 0.0
    %817 = vmatprep.subr.mxu0 0.0
    %818 = vmatpush2.msra.mxu0 0.0
    %819 = vmatprep.subr.mxu0 0.0
    %820 = vmatpush2.msra.mxu0 0.0
    %821 = vmatprep.subr.mxu0 0.0
    %822 = vmatpush2.msra.mxu0 0.0
    %823 = vmatprep.subr.mxu0 0.0
    %824 = vmatpush2.msra.mxu0 0.0
    %825 = vmatprep.subr.mxu0 0.0
    %826 = vmatpush2.msra.mxu0 0.0
    %827 = vmatprep.subr.mxu0 0.0
    %828 = vmatpush2.msra.mxu0 0.0
    %829 = vmatprep.subr.mxu0 0.0
    %830 = vmatpush2.msra.mxu0 0.0
    %831 = vmatprep.subr.mxu0 0.0
    %832 = vmatpush2.msra.mxu0 0.0
    %833 = vmatprep.subr.mxu0 0.0
    %834 = vmatpush2.msra.mxu0 0.0
    %835 = vmatprep.subr.mxu0 0.0
    %836 = vmatpush2.msra.mxu0 0.0
    %837 = vmatprep.subr.mxu0 0.0
    %838 = vmatpush2.msra.mxu0 0.0
    %839 = vmatprep.subr.mxu0 0.0
    %840 = vmatpush2.msra.mxu0 0.0
    %841 = vmatprep.mubr.f32.mxu0 0.0
    %842 = vmatmul.mubr.f32.gmra.mxu0 %v481
    %v843 = vpop.f32.mrf.mxu0
    %v844 = vadd.f32 0.0, %v843
    %v845 = vpop.f32.mrf.mxu0
    %846 = vdwg.mxu0
    %v847 = vadd.f32 %v165, %v844
    %848 = vmatprep.subr.mxu0 0.0
    %849 = vmatpush1.msra.mxu0 0.0
    %850 = vmatprep.subr.mxu0 0.0
    %851 = vmatpush1.msra.mxu0 0.0
    %852 = vmatprep.subr.mxu0 0.0
    %853 = vmatpush1.msra.mxu0 0.0
    %854 = vmatprep.subr.mxu0 0.0
    %855 = vmatpush1.msra.mxu0 0.0
    %856 = vmatprep.subr.mxu0 0.0
    %857 = vmatpush1.msra.mxu0 0.0
    %858 = vmatprep.subr.mxu0 0.0
    %859 = vmatpush1.msra.mxu0 0.0
    %860 = vmatprep.subr.mxu0 0.0
    %861 = vmatpush1.msra.mxu0 0.0
    %862 = vmatprep.subr.mxu0 0.0
    %863 = vmatpush1.msra.mxu0 0.0
    %864 = vmatprep.subr.mxu0 0.0
    %865 = vmatpush1.msra.mxu0 0.0
    %866 = vmatprep.subr.mxu0 0.0
    %867 = vmatpush1.msra.mxu0 0.0
    %868 = vmatprep.subr.mxu0 0.0
    %869 = vmatpush1.msra.mxu0 0.0
    %870 = vmatprep.subr.mxu0 0.0
    %871 = vmatpush1.msra.mxu0 0.0
    %872 = vmatprep.subr.mxu0 0.0
    %873 = vmatpush1.msra.mxu0 0.0
    %874 = vmatprep.subr.mxu0 0.0
    %875 = vmatpush1.msra.mxu0 0.0
    %876 = vmatprep.subr.mxu0 0.0
    %877 = vmatpush1.msra.mxu0 %v172
    %878 = vmatprep.subr.mxu0 0.0
    %879 = vmatpush1.msra.mxu0 %v171
    %880 = vmatprep.subr.mxu0 0.0
    %881 = vmatpush2.msra.mxu0 0.0
    %882 = vmatprep.subr.mxu0 0.0
    %883 = vmatpush2.msra.mxu0 0.0
    %884 = vmatprep.subr.mxu0 0.0
    %885 = vmatpush2.msra.mxu0 0.0
    %886 = vmatprep.subr.mxu0 0.0
    %887 = vmatpush2.msra.mxu0 0.0
    %888 = vmatprep.subr.mxu0 0.0
    %889 = vmatpush2.msra.mxu0 0.0
    %890 = vmatprep.subr.mxu0 0.0
    %891 = vmatpush2.msra.mxu0 0.0
    %892 = vmatprep.subr.mxu0 0.0
    %893 = vmatpush2.msra.mxu0 0.0
    %894 = vmatprep.subr.mxu0 0.0
    %895 = vmatpush2.msra.mxu0 0.0
    %896 = vmatprep.subr.mxu0 0.0
    %897 = vmatpush2.msra.mxu0 0.0
    %898 = vmatprep.subr.mxu0 0.0
    %899 = vmatpush2.msra.mxu0 0.0
    %900 = vmatprep.subr.mxu0 0.0
    %901 = vmatpush2.msra.mxu0 0.0
    %902 = vmatprep.subr.mxu0 0.0
    %903 = vmatpush2.msra.mxu0 0.0
    %904 = vmatprep.subr.mxu0 0.0
    %905 = vmatpush2.msra.mxu0 0.0
    %906 = vmatprep.subr.mxu0 0.0
    %907 = vmatpush2.msra.mxu0 0.0
    %908 = vmatprep.subr.mxu0 0.0
    %909 = vmatpush2.msra.mxu0 0.0
    %910 = vmatprep.subr.mxu0 0.0
    %911 = vmatpush2.msra.mxu0 0.0
    %912 = vmatprep.mubr.f32.mxu0 0.0
    %913 = vmatmul.mubr.f32.gmra.mxu0 %v703
    %v914 = vpop.f32.mrf.mxu0
    %v915 = vadd.f32 0.0, %v914
    %v916 = vpop.f32.mrf.mxu0
    %917 = vdwg.mxu0
    %v918 = vadd.f32 %v847, %v915
    %v919 = vld [vmem:[#allocation3 + $0x5] sm:$0x1]
    %v920 = vld [vmem:[#allocation3 + $0xd] sm:$0x1]
    %v923 = vrot.slane %v920, 7
    %v924 = vsel %vm86, %v923, %v919
    %v925 = vsel %vm88, %v924, 0
    %927 = vmatprep.subr.mxu0 0.0
    %928 = vmatpush1.msra.mxu0 0.0
    %929 = vmatprep.subr.mxu0 0.0
    %930 = vmatpush1.msra.mxu0 0.0
    %931 = vmatprep.subr.mxu0 0.0
    %932 = vmatpush1.msra.mxu0 0.0
    %933 = vmatprep.subr.mxu0 0.0
    %934 = vmatpush1.msra.mxu0 0.0
    %935 = vmatprep.subr.mxu0 0.0
    %936 = vmatpush1.msra.mxu0 0.0
    %937 = vmatprep.subr.mxu0 0.0
    %938 = vmatpush1.msra.mxu0 0.0
    %939 = vmatprep.subr.mxu0 0.0
    %940 = vmatpush1.msra.mxu0 0.0
    %941 = vmatprep.subr.mxu0 0.0
    %942 = vmatpush1.msra.mxu0 0.0
    %943 = vmatprep.subr.mxu0 0.0
    %944 = vmatpush1.msra.mxu0 0.0
    %945 = vmatprep.subr.mxu0 0.0
    %946 = vmatpush1.msra.mxu0 0.0
    %947 = vmatprep.subr.mxu0 0.0
    %948 = vmatpush1.msra.mxu0 0.0
    %949 = vmatprep.subr.mxu0 0.0
    %950 = vmatpush1.msra.mxu0 0.0
    %951 = vmatprep.subr.mxu0 0.0
    %952 = vmatpush1.msra.mxu0 0.0
    %953 = vmatprep.subr.mxu0 0.0
    %954 = vmatpush1.msra.mxu0 0.0
    %955 = vmatprep.subr.mxu0 0.0
    %956 = vmatpush1.msra.mxu0 %v254
    %957 = vmatprep.subr.mxu0 0.0
    %958 = vmatpush1.msra.mxu0 %v253
    %959 = vmatprep.subr.mxu0 0.0
    %960 = vmatpush2.msra.mxu0 0.0
    %961 = vmatprep.subr.mxu0 0.0
    %962 = vmatpush2.msra.mxu0 0.0
    %963 = vmatprep.subr.mxu0 0.0
    %964 = vmatpush2.msra.mxu0 0.0
    %965 = vmatprep.subr.mxu0 0.0
    %966 = vmatpush2.msra.mxu0 0.0
    %967 = vmatprep.subr.mxu0 0.0
    %968 = vmatpush2.msra.mxu0 0.0
    %969 = vmatprep.subr.mxu0 0.0
    %970 = vmatpush2.msra.mxu0 0.0
    %971 = vmatprep.subr.mxu0 0.0
    %972 = vmatpush2.msra.mxu0 0.0
    %973 = vmatprep.subr.mxu0 0.0
    %974 = vmatpush2.msra.mxu0 0.0
    %975 = vmatprep.subr.mxu0 0.0
    %976 = vmatpush2.msra.mxu0 0.0
    %977 = vmatprep.subr.mxu0 0.0
    %978 = vmatpush2.msra.mxu0 0.0
    %979 = vmatprep.subr.mxu0 0.0
    %980 = vmatpush2.msra.mxu0 0.0
    %981 = vmatprep.subr.mxu0 0.0
    %982 = vmatpush2.msra.mxu0 0.0
    %983 = vmatprep.subr.mxu0 0.0
    %984 = vmatpush2.msra.mxu0 0.0
    %985 = vmatprep.subr.mxu0 0.0
    %986 = vmatpush2.msra.mxu0 0.0
    %987 = vmatprep.subr.mxu0 0.0
    %988 = vmatpush2.msra.mxu0 0.0
    %989 = vmatprep.subr.mxu0 0.0
    %990 = vmatpush2.msra.mxu0 0.0
    %991 = vmatprep.mubr.f32.mxu0 0.0
    %992 = vmatmul.mubr.f32.gmra.mxu0 %v925
    %v993 = vpop.f32.mrf.mxu0
    %v994 = vadd.f32 0.0, %v993
    %v995 = vpop.f32.mrf.mxu0
    %996 = vdwg.mxu0
    %v997 = vadd.f32 %v918, %v994
    %v998 = vmax.f32 %v997, 0.0
    %999 = vmatprep.subr.mxu0 0.0
    %1000 = vmatpush1.msra.mxu0 0.0
    %1001 = vmatprep.subr.mxu0 0.0
    %1002 = vmatpush1.msra.mxu0 0.0
    %1003 = vmatprep.subr.mxu0 0.0
    %1004 = vmatpush1.msra.mxu0 0.0
    %1005 = vmatprep.subr.mxu0 0.0
    %1006 = vmatpush1.msra.mxu0 0.0
    %1007 = vmatprep.subr.mxu0 0.0
    %1008 = vmatpush1.msra.mxu0 0.0
    %1009 = vmatprep.subr.mxu0 0.0
    %1010 = vmatpush1.msra.mxu0 0.0
    %1011 = vmatprep.subr.mxu0 0.0
    %1012 = vmatpush1.msra.mxu0 0.0
    %1013 = vmatprep.subr.mxu0 0.0
    %1014 = vmatpush1.msra.mxu0 0.0
    %1015 = vmatprep.subr.mxu0 0.0
    %1016 = vmatpush1.msra.mxu0 0.0
    %1017 = vmatprep.subr.mxu0 0.0
    %1018 = vmatpush1.msra.mxu0 0.0
    %1019 = vmatprep.subr.mxu0 0.0
    %1020 = vmatpush1.msra.mxu0 0.0
    %1021 = vmatprep.subr.mxu0 0.0
    %1022 = vmatpush1.msra.mxu0 0.0
    %1023 = vmatprep.subr.mxu0 0.0
    %1024 = vmatpush1.msra.mxu0 0.0
    %1025 = vmatprep.subr.mxu0 0.0
    %1026 = vmatpush1.msra.mxu0 0.0
    %1027 = vmatprep.subr.mxu0 0.0
    %1028 = vmatpush1.msra.mxu0 %v82
    %1029 = vmatprep.subr.mxu0 0.0
    %1030 = vmatpush1.msra.mxu0 %v81
    %1031 = vmatprep.subr.mxu0 0.0
    %1032 = vmatpush2.msra.mxu0 0.0
    %1033 = vmatprep.subr.mxu0 0.0
    %1034 = vmatpush2.msra.mxu0 0.0
    %1035 = vmatprep.subr.mxu0 0.0
    %1036 = vmatpush2.msra.mxu0 0.0
    %1037 = vmatprep.subr.mxu0 0.0
    %1038 = vmatpush2.msra.mxu0 0.0
    %1039 = vmatprep.subr.mxu0 0.0
    %1040 = vmatpush2.msra.mxu0 0.0
    %1041 = vmatprep.subr.mxu0 0.0
    %1042 = vmatpush2.msra.mxu0 0.0
    %1043 = vmatprep.subr.mxu0 0.0
    %1044 = vmatpush2.msra.mxu0 0.0
    %1045 = vmatprep.subr.mxu0 0.0
    %1046 = vmatpush2.msra.mxu0 0.0
    %1047 = vmatprep.subr.mxu0 0.0
    %1048 = vmatpush2.msra.mxu0 0.0
    %1049 = vmatprep.subr.mxu0 0.0
    %1050 = vmatpush2.msra.mxu0 0.0
    %1051 = vmatprep.subr.mxu0 0.0
    %1052 = vmatpush2.msra.mxu0 0.0
    %1053 = vmatprep.subr.mxu0 0.0
    %1054 = vmatpush2.msra.mxu0 0.0
    %1055 = vmatprep.subr.mxu0 0.0
    %1056 = vmatpush2.msra.mxu0 0.0
    %1057 = vmatprep.subr.mxu0 0.0
    %1058 = vmatpush2.msra.mxu0 0.0
    %1059 = vmatprep.subr.mxu0 0.0
    %1060 = vmatpush2.msra.mxu0 0.0
    %1061 = vmatprep.subr.mxu0 0.0
    %1062 = vmatpush2.msra.mxu0 0.0
    %1063 = vmatprep.mubr.f32.mxu0 0.0
    %1064 = vmatmul.mubr.f32.gmra.mxu0 %v703
    %v1065 = vpop.f32.mrf.mxu0
    %v1066 = vadd.f32 0.0, %v1065
    %v1067 = vpop.f32.mrf.mxu0
    %1068 = vdwg.mxu0
    %v1069 = vadd.f32 %v165, %v1066
    %1070 = vmatprep.subr.mxu0 0.0
    %1071 = vmatpush1.msra.mxu0 0.0
    %1072 = vmatprep.subr.mxu0 0.0
    %1073 = vmatpush1.msra.mxu0 0.0
    %1074 = vmatprep.subr.mxu0 0.0
    %1075 = vmatpush1.msra.mxu0 0.0
    %1076 = vmatprep.subr.mxu0 0.0
    %1077 = vmatpush1.msra.mxu0 0.0
    %1078 = vmatprep.subr.mxu0 0.0
    %1079 = vmatpush1.msra.mxu0 0.0
    %1080 = vmatprep.subr.mxu0 0.0
    %1081 = vmatpush1.msra.mxu0 0.0
    %1082 = vmatprep.subr.mxu0 0.0
    %1083 = vmatpush1.msra.mxu0 0.0
    %1084 = vmatprep.subr.mxu0 0.0
    %1085 = vmatpush1.msra.mxu0 0.0
    %1086 = vmatprep.subr.mxu0 0.0
    %1087 = vmatpush1.msra.mxu0 0.0
    %1088 = vmatprep.subr.mxu0 0.0
    %1089 = vmatpush1.msra.mxu0 0.0
    %1090 = vmatprep.subr.mxu0 0.0
    %1091 = vmatpush1.msra.mxu0 0.0
    %1092 = vmatprep.subr.mxu0 0.0
    %1093 = vmatpush1.msra.mxu0 0.0
    %1094 = vmatprep.subr.mxu0 0.0
    %1095 = vmatpush1.msra.mxu0 0.0
    %1096 = vmatprep.subr.mxu0 0.0
    %1097 = vmatpush1.msra.mxu0 0.0
    %1098 = vmatprep.subr.mxu0 0.0
    %1099 = vmatpush1.msra.mxu0 %v172
    %1100 = vmatprep.subr.mxu0 0.0
    %1101 = vmatpush1.msra.mxu0 %v171
    %1102 = vmatprep.subr.mxu0 0.0
    %1103 = vmatpush2.msra.mxu0 0.0
    %1104 = vmatprep.subr.mxu0 0.0
    %1105 = vmatpush2.msra.mxu0 0.0
    %1106 = vmatprep.subr.mxu0 0.0
    %1107 = vmatpush2.msra.mxu0 0.0
    %1108 = vmatprep.subr.mxu0 0.0
    %1109 = vmatpush2.msra.mxu0 0.0
    %1110 = vmatprep.subr.mxu0 0.0
    %1111 = vmatpush2.msra.mxu0 0.0
    %1112 = vmatprep.subr.mxu0 0.0
    %1113 = vmatpush2.msra.mxu0 0.0
    %1114 = vmatprep.subr.mxu0 0.0
    %1115 = vmatpush2.msra.mxu0 0.0
    %1116 = vmatprep.subr.mxu0 0.0
    %1117 = vmatpush2.msra.mxu0 0.0
    %1118 = vmatprep.subr.mxu0 0.0
    %1119 = vmatpush2.msra.mxu0 0.0
    %1120 = vmatprep.subr.mxu0 0.0
    %1121 = vmatpush2.msra.mxu0 0.0
    %1122 = vmatprep.subr.mxu0 0.0
    %1123 = vmatpush2.msra.mxu0 0.0
    %1124 = vmatprep.subr.mxu0 0.0
    %1125 = vmatpush2.msra.mxu0 0.0
    %1126 = vmatprep.subr.mxu0 0.0
    %1127 = vmatpush2.msra.mxu0 0.0
    %1128 = vmatprep.subr.mxu0 0.0
    %1129 = vmatpush2.msra.mxu0 0.0
    %1130 = vmatprep.subr.mxu0 0.0
    %1131 = vmatpush2.msra.mxu0 0.0
    %1132 = vmatprep.subr.mxu0 0.0
    %1133 = vmatpush2.msra.mxu0 0.0
    %1134 = vmatprep.mubr.f32.mxu0 0.0
    %1135 = vmatmul.mubr.f32.gmra.mxu0 %v925
    %v1136 = vpop.f32.mrf.mxu0
    %v1137 = vadd.f32 0.0, %v1136
    %v1138 = vpop.f32.mrf.mxu0
    %1139 = vdwg.mxu0
    %v1140 = vadd.f32 %v1069, %v1137
    %v1141 = vld [vmem:[#allocation3 + $0x6] sm:$0x1]
    %v1142 = vld [vmem:[#allocation3 + $0xe] sm:$0x1]
    %v1145 = vrot.slane %v1142, 7
    %v1146 = vsel %vm86, %v1145, %v1141
    %v1147 = vsel %vm88, %v1146, 0
    %1149 = vmatprep.subr.mxu0 0.0
    %1150 = vmatpush1.msra.mxu0 0.0
    %1151 = vmatprep.subr.mxu0 0.0
    %1152 = vmatpush1.msra.mxu0 0.0
    %1153 = vmatprep.subr.mxu0 0.0
    %1154 = vmatpush1.msra.mxu0 0.0
    %1155 = vmatprep.subr.mxu0 0.0
    %1156 = vmatpush1.msra.mxu0 0.0
    %1157 = vmatprep.subr.mxu0 0.0
    %1158 = vmatpush1.msra.mxu0 0.0
    %1159 = vmatprep.subr.mxu0 0.0
    %1160 = vmatpush1.msra.mxu0 0.0
    %1161 = vmatprep.subr.mxu0 0.0
    %1162 = vmatpush1.msra.mxu0 0.0
    %1163 = vmatprep.subr.mxu0 0.0
    %1164 = vmatpush1.msra.mxu0 0.0
    %1165 = vmatprep.subr.mxu0 0.0
    %1166 = vmatpush1.msra.mxu0 0.0
    %1167 = vmatprep.subr.mxu0 0.0
    %1168 = vmatpush1.msra.mxu0 0.0
    %1169 = vmatprep.subr.mxu0 0.0
    %1170 = vmatpush1.msra.mxu0 0.0
    %1171 = vmatprep.subr.mxu0 0.0
    %1172 = vmatpush1.msra.mxu0 0.0
    %1173 = vmatprep.subr.mxu0 0.0
    %1174 = vmatpush1.msra.mxu0 0.0
    %1175 = vmatprep.subr.mxu0 0.0
    %1176 = vmatpush1.msra.mxu0 0.0
    %1177 = vmatprep.subr.mxu0 0.0
    %1178 = vmatpush1.msra.mxu0 %v254
    %1179 = vmatprep.subr.mxu0 0.0
    %1180 = vmatpush1.msra.mxu0 %v253
    %1181 = vmatprep.subr.mxu0 0.0
    %1182 = vmatpush2.msra.mxu0 0.0
    %1183 = vmatprep.subr.mxu0 0.0
    %1184 = vmatpush2.msra.mxu0 0.0
    %1185 = vmatprep.subr.mxu0 0.0
    %1186 = vmatpush2.msra.mxu0 0.0
    %1187 = vmatprep.subr.mxu0 0.0
    %1188 = vmatpush2.msra.mxu0 0.0
    %1189 = vmatprep.subr.mxu0 0.0
    %1190 = vmatpush2.msra.mxu0 0.0
    %1191 = vmatprep.subr.mxu0 0.0
    %1192 = vmatpush2.msra.mxu0 0.0
    %1193 = vmatprep.subr.mxu0 0.0
    %1194 = vmatpush2.msra.mxu0 0.0
    %1195 = vmatprep.subr.mxu0 0.0
    %1196 = vmatpush2.msra.mxu0 0.0
    %1197 = vmatprep.subr.mxu0 0.0
    %1198 = vmatpush2.msra.mxu0 0.0
    %1199 = vmatprep.subr.mxu0 0.0
    %1200 = vmatpush2.msra.mxu0 0.0
    %1201 = vmatprep.subr.mxu0 0.0
    %1202 = vmatpush2.msra.mxu0 0.0
    %1203 = vmatprep.subr.mxu0 0.0
    %1204 = vmatpush2.msra.mxu0 0.0
    %1205 = vmatprep.subr.mxu0 0.0
    %1206 = vmatpush2.msra.mxu0 0.0
    %1207 = vmatprep.subr.mxu0 0.0
    %1208 = vmatpush2.msra.mxu0 0.0
    %1209 = vmatprep.subr.mxu0 0.0
    %1210 = vmatpush2.msra.mxu0 0.0
    %1211 = vmatprep.subr.mxu0 0.0
    %1212 = vmatpush2.msra.mxu0 0.0
    %1213 = vmatprep.mubr.f32.mxu0 0.0
    %1214 = vmatmul.mubr.f32.gmra.mxu0 %v1147
    %v1215 = vpop.f32.mrf.mxu0
    %v1216 = vadd.f32 0.0, %v1215
    %v1217 = vpop.f32.mrf.mxu0
    %1218 = vdwg.mxu0
    %v1219 = vadd.f32 %v1140, %v1216
    %v1220 = vmax.f32 %v1219, 0.0
    %1221 = vmatprep.subr.mxu0 0.0
    %1222 = vmatpush1.msra.mxu0 0.0
    %1223 = vmatprep.subr.mxu0 0.0
    %1224 = vmatpush1.msra.mxu0 0.0
    %1225 = vmatprep.subr.mxu0 0.0
    %1226 = vmatpush1.msra.mxu0 0.0
    %1227 = vmatprep.subr.mxu0 0.0
    %1228 = vmatpush1.msra.mxu0 0.0
    %1229 = vmatprep.subr.mxu0 0.0
    %1230 = vmatpush1.msra.mxu0 0.0
    %1231 = vmatprep.subr.mxu0 0.0
    %1232 = vmatpush1.msra.mxu0 0.0
    %1233 = vmatprep.subr.mxu0 0.0
    %1234 = vmatpush1.msra.mxu0 0.0
    %1235 = vmatprep.subr.mxu0 0.0
    %1236 = vmatpush1.msra.mxu0 0.0
    %1237 = vmatprep.subr.mxu0 0.0
    %1238 = vmatpush1.msra.mxu0 0.0
    %1239 = vmatprep.subr.mxu0 0.0
    %1240 = vmatpush1.msra.mxu0 0.0
    %1241 = vmatprep.subr.mxu0 0.0
    %1242 = vmatpush1.msra.mxu0 0.0
    %1243 = vmatprep.subr.mxu0 0.0
    %1244 = vmatpush1.msra.mxu0 0.0
    %1245 = vmatprep.subr.mxu0 0.0
    %1246 = vmatpush1.msra.mxu0 0.0
    %1247 = vmatprep.subr.mxu0 0.0
    %1248 = vmatpush1.msra.mxu0 0.0
    %1249 = vmatprep.subr.mxu0 0.0
    %1250 = vmatpush1.msra.mxu0 %v82
    %1251 = vmatprep.subr.mxu0 0.0
    %1252 = vmatpush1.msra.mxu0 %v81
    %1253 = vmatprep.subr.mxu0 0.0
    %1254 = vmatpush2.msra.mxu0 0.0
    %1255 = vmatprep.subr.mxu0 0.0
    %1256 = vmatpush2.msra.mxu0 0.0
    %1257 = vmatprep.subr.mxu0 0.0
    %1258 = vmatpush2.msra.mxu0 0.0
    %1259 = vmatprep.subr.mxu0 0.0
    %1260 = vmatpush2.msra.mxu0 0.0
    %1261 = vmatprep.subr.mxu0 0.0
    %1262 = vmatpush2.msra.mxu0 0.0
    %1263 = vmatprep.subr.mxu0 0.0
    %1264 = vmatpush2.msra.mxu0 0.0
    %1265 = vmatprep.subr.mxu0 0.0
    %1266 = vmatpush2.msra.mxu0 0.0
    %1267 = vmatprep.subr.mxu0 0.0
    %1268 = vmatpush2.msra.mxu0 0.0
    %1269 = vmatprep.subr.mxu0 0.0
    %1270 = vmatpush2.msra.mxu0 0.0
    %1271 = vmatprep.subr.mxu0 0.0
    %1272 = vmatpush2.msra.mxu0 0.0
    %1273 = vmatprep.subr.mxu0 0.0
    %1274 = vmatpush2.msra.mxu0 0.0
    %1275 = vmatprep.subr.mxu0 0.0
    %1276 = vmatpush2.msra.mxu0 0.0
    %1277 = vmatprep.subr.mxu0 0.0
    %1278 = vmatpush2.msra.mxu0 0.0
    %1279 = vmatprep.subr.mxu0 0.0
    %1280 = vmatpush2.msra.mxu0 0.0
    %1281 = vmatprep.subr.mxu0 0.0
    %1282 = vmatpush2.msra.mxu0 0.0
    %1283 = vmatprep.subr.mxu0 0.0
    %1284 = vmatpush2.msra.mxu0 0.0
    %1285 = vmatprep.mubr.f32.mxu0 0.0
    %1286 = vmatmul.mubr.f32.gmra.mxu0 %v925
    %v1287 = vpop.f32.mrf.mxu0
    %v1288 = vadd.f32 0.0, %v1287
    %v1289 = vpop.f32.mrf.mxu0
    %1290 = vdwg.mxu0
    %v1291 = vadd.f32 %v165, %v1288
    %1292 = vmatprep.subr.mxu0 0.0
    %1293 = vmatpush1.msra.mxu0 0.0
    %1294 = vmatprep.subr.mxu0 0.0
    %1295 = vmatpush1.msra.mxu0 0.0
    %1296 = vmatprep.subr.mxu0 0.0
    %1297 = vmatpush1.msra.mxu0 0.0
    %1298 = vmatprep.subr.mxu0 0.0
    %1299 = vmatpush1.msra.mxu0 0.0
    %1300 = vmatprep.subr.mxu0 0.0
    %1301 = vmatpush1.msra.mxu0 0.0
    %1302 = vmatprep.subr.mxu0 0.0
    %1303 = vmatpush1.msra.mxu0 0.0
    %1304 = vmatprep.subr.mxu0 0.0
    %1305 = vmatpush1.msra.mxu0 0.0
    %1306 = vmatprep.subr.mxu0 0.0
    %1307 = vmatpush1.msra.mxu0 0.0
    %1308 = vmatprep.subr.mxu0 0.0
    %1309 = vmatpush1.msra.mxu0 0.0
    %1310 = vmatprep.subr.mxu0 0.0
    %1311 = vmatpush1.msra.mxu0 0.0
    %1312 = vmatprep.subr.mxu0 0.0
    %1313 = vmatpush1.msra.mxu0 0.0
    %1314 = vmatprep.subr.mxu0 0.0
    %1315 = vmatpush1.msra.mxu0 0.0
    %1316 = vmatprep.subr.mxu0 0.0
    %1317 = vmatpush1.msra.mxu0 0.0
    %1318 = vmatprep.subr.mxu0 0.0
    %1319 = vmatpush1.msra.mxu0 0.0
    %1320 = vmatprep.subr.mxu0 0.0
    %1321 = vmatpush1.msra.mxu0 %v172
    %1322 = vmatprep.subr.mxu0 0.0
    %1323 = vmatpush1.msra.mxu0 %v171
    %1324 = vmatprep.subr.mxu0 0.0
    %1325 = vmatpush2.msra.mxu0 0.0
    %1326 = vmatprep.subr.mxu0 0.0
    %1327 = vmatpush2.msra.mxu0 0.0
    %1328 = vmatprep.subr.mxu0 0.0
    %1329 = vmatpush2.msra.mxu0 0.0
    %1330 = vmatprep.subr.mxu0 0.0
    %1331 = vmatpush2.msra.mxu0 0.0
    %1332 = vmatprep.subr.mxu0 0.0
    %1333 = vmatpush2.msra.mxu0 0.0
    %1334 = vmatprep.subr.mxu0 0.0
    %1335 = vmatpush2.msra.mxu0 0.0
    %1336 = vmatprep.subr.mxu0 0.0
    %1337 = vmatpush2.msra.mxu0 0.0
    %1338 = vmatprep.subr.mxu0 0.0
    %1339 = vmatpush2.msra.mxu0 0.0
    %1340 = vmatprep.subr.mxu0 0.0
    %1341 = vmatpush2.msra.mxu0 0.0
    %1342 = vmatprep.subr.mxu0 0.0
    %1343 = vmatpush2.msra.mxu0 0.0
    %1344 = vmatprep.subr.mxu0 0.0
    %1345 = vmatpush2.msra.mxu0 0.0
    %1346 = vmatprep.subr.mxu0 0.0
    %1347 = vmatpush2.msra.mxu0 0.0
    %1348 = vmatprep.subr.mxu0 0.0
    %1349 = vmatpush2.msra.mxu0 0.0
    %1350 = vmatprep.subr.mxu0 0.0
    %1351 = vmatpush2.msra.mxu0 0.0
    %1352 = vmatprep.subr.mxu0 0.0
    %1353 = vmatpush2.msra.mxu0 0.0
    %1354 = vmatprep.subr.mxu0 0.0
    %1355 = vmatpush2.msra.mxu0 0.0
    %1356 = vmatprep.mubr.f32.mxu0 0.0
    %1357 = vmatmul.mubr.f32.gmra.mxu0 %v1147
    %v1358 = vpop.f32.mrf.mxu0
    %v1359 = vadd.f32 0.0, %v1358
    %v1360 = vpop.f32.mrf.mxu0
    %1361 = vdwg.mxu0
    %v1362 = vadd.f32 %v1291, %v1359
    %v1363 = vld [vmem:[#allocation3 + $0x7] sm:$0x1]
    %v1364 = vld [vmem:[#allocation3 + $0xf] sm:$0x1]
    %v1367 = vrot.slane %v1364, 7
    %v1368 = vsel %vm86, %v1367, %v1363
    %v1369 = vsel %vm88, %v1368, 0
    %1371 = vmatprep.subr.mxu0 0.0
    %1372 = vmatpush1.msra.mxu0 0.0
    %1373 = vmatprep.subr.mxu0 0.0
    %1374 = vmatpush1.msra.mxu0 0.0
    %1375 = vmatprep.subr.mxu0 0.0
    %1376 = vmatpush1.msra.mxu0 0.0
    %1377 = vmatprep.subr.mxu0 0.0
    %1378 = vmatpush1.msra.mxu0 0.0
    %1379 = vmatprep.subr.mxu0 0.0
    %1380 = vmatpush1.msra.mxu0 0.0
    %1381 = vmatprep.subr.mxu0 0.0
    %1382 = vmatpush1.msra.mxu0 0.0
    %1383 = vmatprep.subr.mxu0 0.0
    %1384 = vmatpush1.msra.mxu0 0.0
    %1385 = vmatprep.subr.mxu0 0.0
    %1386 = vmatpush1.msra.mxu0 0.0
    %1387 = vmatprep.subr.mxu0 0.0
    %1388 = vmatpush1.msra.mxu0 0.0
    %1389 = vmatprep.subr.mxu0 0.0
    %1390 = vmatpush1.msra.mxu0 0.0
    %1391 = vmatprep.subr.mxu0 0.0
    %1392 = vmatpush1.msra.mxu0 0.0
    %1393 = vmatprep.subr.mxu0 0.0
    %1394 = vmatpush1.msra.mxu0 0.0
    %1395 = vmatprep.subr.mxu0 0.0
    %1396 = vmatpush1.msra.mxu0 0.0
    %1397 = vmatprep.subr.mxu0 0.0
    %1398 = vmatpush1.msra.mxu0 0.0
    %1399 = vmatprep.subr.mxu0 0.0
    %1400 = vmatpush1.msra.mxu0 %v254
    %1401 = vmatprep.subr.mxu0 0.0
    %1402 = vmatpush1.msra.mxu0 %v253
    %1403 = vmatprep.subr.mxu0 0.0
    %1404 = vmatpush2.msra.mxu0 0.0
    %1405 = vmatprep.subr.mxu0 0.0
    %1406 = vmatpush2.msra.mxu0 0.0
    %1407 = vmatprep.subr.mxu0 0.0
    %1408 = vmatpush2.msra.mxu0 0.0
    %1409 = vmatprep.subr.mxu0 0.0
    %1410 = vmatpush2.msra.mxu0 0.0
    %1411 = vmatprep.subr.mxu0 0.0
    %1412 = vmatpush2.msra.mxu0 0.0
    %1413 = vmatprep.subr.mxu0 0.0
    %1414 = vmatpush2.msra.mxu0 0.0
    %1415 = vmatprep.subr.mxu0 0.0
    %1416 = vmatpush2.msra.mxu0 0.0
    %1417 = vmatprep.subr.mxu0 0.0
    %1418 = vmatpush2.msra.mxu0 0.0
    %1419 = vmatprep.subr.mxu0 0.0
    %1420 = vmatpush2.msra.mxu0 0.0
    %1421 = vmatprep.subr.mxu0 0.0
    %1422 = vmatpush2.msra.mxu0 0.0
    %1423 = vmatprep.subr.mxu0 0.0
    %1424 = vmatpush2.msra.mxu0 0.0
    %1425 = vmatprep.subr.mxu0 0.0
    %1426 = vmatpush2.msra.mxu0 0.0
    %1427 = vmatprep.subr.mxu0 0.0
    %1428 = vmatpush2.msra.mxu0 0.0
    %1429 = vmatprep.subr.mxu0 0.0
    %1430 = vmatpush2.msra.mxu0 0.0
    %1431 = vmatprep.subr.mxu0 0.0
    %1432 = vmatpush2.msra.mxu0 0.0
    %1433 = vmatprep.subr.mxu0 0.0
    %1434 = vmatpush2.msra.mxu0 0.0
    %1435 = vmatprep.mubr.f32.mxu0 0.0
    %1436 = vmatmul.mubr.f32.gmra.mxu0 %v1369
    %v1437 = vpop.f32.mrf.mxu0
    %v1438 = vadd.f32 0.0, %v1437
    %v1439 = vpop.f32.mrf.mxu0
    %1440 = vdwg.mxu0
    %v1441 = vadd.f32 %v1362, %v1438
    %v1442 = vmax.f32 %v1441, 0.0
    %v1443 = vld [vmem:[#allocation5] sm:$0xff]
    %v1444 = vld [vmem:[#allocation5 + $0x8] sm:$0xff]
    %v1445 = vld [vmem:[#allocation5 + $0x10] sm:$0xff]
    %v1446 = vld [vmem:[#allocation5 + $0x18] sm:$0xff]
    %v1447 = vld [vmem:[%s5] sm:$0x1]
    %v1448 = vmax.f32 %v332, %v554
    %v1450 = vlaneseq
    %v1451 = vshrl.u32 %v1450, 7
    %v1452 = vsub.s32 0, %v1451
    %v1453 = vrot.slane %v1447, %v1452
    %vm1455 = vcmask 261120
    %v1457 = vsel %vm1455, %v1448, 0
    %1459 = vmatprep.subr.mxu0 0.0
    %1460 = vmatpush1.msra.mxu0 0.0
    %1461 = vmatprep.subr.mxu0 0.0
    %1462 = vmatpush1.msra.mxu0 0.0
    %1463 = vmatprep.subr.mxu0 0.0
    %1464 = vmatpush1.msra.mxu0 0.0
    %1465 = vmatprep.subr.mxu0 0.0
    %1466 = vmatpush1.msra.mxu0 0.0
    %1467 = vmatprep.subr.mxu0 0.0
    %1468 = vmatpush1.msra.mxu0 0.0
    %1469 = vmatprep.subr.mxu0 0.0
    %1470 = vmatpush1.msra.mxu0 0.0
    %1471 = vmatprep.subr.mxu0 0.0
    %1472 = vmatpush1.msra.mxu0 0.0
    %1473 = vmatprep.subr.mxu0 0.0
    %1474 = vmatpush1.msra.mxu0 0.0
    %1475 = vmatprep.subr.mxu0 0.0
    %1476 = vmatpush1.msra.mxu0 0.0
    %1477 = vmatprep.subr.mxu0 0.0
    %1478 = vmatpush1.msra.mxu0 0.0
    %1479 = vmatprep.subr.mxu0 0.0
    %1480 = vmatpush1.msra.mxu0 0.0
    %1481 = vmatprep.subr.mxu0 0.0
    %1482 = vmatpush1.msra.mxu0 0.0
    %1483 = vmatprep.subr.mxu0 0.0
    %1484 = vmatpush1.msra.mxu0 %v1446
    %1485 = vmatprep.subr.mxu0 0.0
    %1486 = vmatpush1.msra.mxu0 %v1445
    %1487 = vmatprep.subr.mxu0 0.0
    %1488 = vmatpush1.msra.mxu0 %v1444
    %1489 = vmatprep.subr.mxu0 0.0
    %1490 = vmatpush1.msra.mxu0 %v1443
    %1491 = vmatprep.subr.mxu0 0.0
    %1492 = vmatpush2.msra.mxu0 0.0
    %1493 = vmatprep.subr.mxu0 0.0
    %1494 = vmatpush2.msra.mxu0 0.0
    %1495 = vmatprep.subr.mxu0 0.0
    %1496 = vmatpush2.msra.mxu0 0.0
    %1497 = vmatprep.subr.mxu0 0.0
    %1498 = vmatpush2.msra.mxu0 0.0
    %1499 = vmatprep.subr.mxu0 0.0
    %1500 = vmatpush2.msra.mxu0 0.0
    %1501 = vmatprep.subr.mxu0 0.0
    %1502 = vmatpush2.msra.mxu0 0.0
    %1503 = vmatprep.subr.mxu0 0.0
    %1504 = vmatpush2.msra.mxu0 0.0
    %1505 = vmatprep.subr.mxu0 0.0
    %1506 = vmatpush2.msra.mxu0 0.0
    %1507 = vmatprep.subr.mxu0 0.0
    %1508 = vmatpush2.msra.mxu0 0.0
    %1509 = vmatprep.subr.mxu0 0.0
    %1510 = vmatpush2.msra.mxu0 0.0
    %1511 = vmatprep.subr.mxu0 0.0
    %1512 = vmatpush2.msra.mxu0 0.0
    %1513 = vmatprep.subr.mxu0 0.0
    %1514 = vmatpush2.msra.mxu0 0.0
    %1515 = vmatprep.subr.mxu0 0.0
    %1516 = vmatpush2.msra.mxu0 0.0
    %1517 = vmatprep.subr.mxu0 0.0
    %1518 = vmatpush2.msra.mxu0 0.0
    %1519 = vmatprep.subr.mxu0 0.0
    %1520 = vmatpush2.msra.mxu0 0.0
    %1521 = vmatprep.subr.mxu0 0.0
    %1522 = vmatpush2.msra.mxu0 0.0
    %1523 = vmatprep.mubr.f32.mxu0 0.0
    %1524 = vmatmul.mubr.f32.gmra.mxu0 %v1457
    %v1525 = vpop.f32.mrf.mxu0
    %v1526 = vadd.f32 %v1453, %v1525
    %v1527 = vpop.f32.mrf.mxu0
    %1528 = vdwg.mxu0
    %v1529 = vmax.f32 %v776, %v998
    %v1531 = vsel %vm1455, %v1529, 0
    %1533 = vmatprep.subr.mxu0 0.0
    %1534 = vmatpush1.msra.mxu0 0.0
    %1535 = vmatprep.subr.mxu0 0.0
    %1536 = vmatpush1.msra.mxu0 0.0
    %1537 = vmatprep.subr.mxu0 0.0
    %1538 = vmatpush1.msra.mxu0 0.0
    %1539 = vmatprep.subr.mxu0 0.0
    %1540 = vmatpush1.msra.mxu0 0.0
    %1541 = vmatprep.subr.mxu0 0.0
    %1542 = vmatpush1.msra.mxu0 0.0
    %1543 = vmatprep.subr.mxu0 0.0
    %1544 = vmatpush1.msra.mxu0 0.0
    %1545 = vmatprep.subr.mxu0 0.0
    %1546 = vmatpush1.msra.mxu0 0.0
    %1547 = vmatprep.subr.mxu0 0.0
    %1548 = vmatpush1.msra.mxu0 0.0
    %1549 = vmatprep.subr.mxu0 0.0
    %1550 = vmatpush1.msra.mxu0 0.0
    %1551 = vmatprep.subr.mxu0 0.0
    %1552 = vmatpush1.msra.mxu0 0.0
    %1553 = vmatprep.subr.mxu0 0.0
    %1554 = vmatpush1.msra.mxu0 0.0
    %1555 = vmatprep.subr.mxu0 0.0
    %1556 = vmatpush1.msra.mxu0 0.0
    %1557 = vmatprep.subr.mxu0 0.0
    %1558 = vmatpush1.msra.mxu0 %v1446
    %1559 = vmatprep.subr.mxu0 0.0
    %1560 = vmatpush1.msra.mxu0 %v1445
    %1561 = vmatprep.subr.mxu0 0.0
    %1562 = vmatpush1.msra.mxu0 %v1444
    %1563 = vmatprep.subr.mxu0 0.0
    %1564 = vmatpush1.msra.mxu0 %v1443
    %1565 = vmatprep.subr.mxu0 0.0
    %1566 = vmatpush2.msra.mxu0 0.0
    %1567 = vmatprep.subr.mxu0 0.0
    %1568 = vmatpush2.msra.mxu0 0.0
    %1569 = vmatprep.subr.mxu0 0.0
    %1570 = vmatpush2.msra.mxu0 0.0
    %1571 = vmatprep.subr.mxu0 0.0
    %1572 = vmatpush2.msra.mxu0 0.0
    %1573 = vmatprep.subr.mxu0 0.0
    %1574 = vmatpush2.msra.mxu0 0.0
    %1575 = vmatprep.subr.mxu0 0.0
    %1576 = vmatpush2.msra.mxu0 0.0
    %1577 = vmatprep.subr.mxu0 0.0
    %1578 = vmatpush2.msra.mxu0 0.0
    %1579 = vmatprep.subr.mxu0 0.0
    %1580 = vmatpush2.msra.mxu0 0.0
    %1581 = vmatprep.subr.mxu0 0.0
    %1582 = vmatpush2.msra.mxu0 0.0
    %1583 = vmatprep.subr.mxu0 0.0
    %1584 = vmatpush2.msra.mxu0 0.0
    %1585 = vmatprep.subr.mxu0 0.0
    %1586 = vmatpush2.msra.mxu0 0.0
    %1587 = vmatprep.subr.mxu0 0.0
    %1588 = vmatpush2.msra.mxu0 0.0
    %1589 = vmatprep.subr.mxu0 0.0
    %1590 = vmatpush2.msra.mxu0 0.0
    %1591 = vmatprep.subr.mxu0 0.0
    %1592 = vmatpush2.msra.mxu0 0.0
    %1593 = vmatprep.subr.mxu0 0.0
    %1594 = vmatpush2.msra.mxu0 0.0
    %1595 = vmatprep.subr.mxu0 0.0
    %1596 = vmatpush2.msra.mxu0 0.0
    %1597 = vmatprep.mubr.f32.mxu0 0.0
    %1598 = vmatmul.mubr.f32.gmra.mxu0 %v1531
    %v1599 = vpop.f32.mrf.mxu0
    %v1600 = vadd.f32 %v1453, %v1599
    %v1601 = vpop.f32.mrf.mxu0
    %1602 = vdwg.mxu0
    %v1603 = vmax.f32 %v1220, %v1442
    %v1605 = vsel %vm1455, %v1603, 0
    %1607 = vmatprep.subr.mxu0 0.0
    %1608 = vmatpush1.msra.mxu0 0.0
    %1609 = vmatprep.subr.mxu0 0.0
    %1610 = vmatpush1.msra.mxu0 0.0
    %1611 = vmatprep.subr.mxu0 0.0
    %1612 = vmatpush1.msra.mxu0 0.0
    %1613 = vmatprep.subr.mxu0 0.0
    %1614 = vmatpush1.msra.mxu0 0.0
    %1615 = vmatprep.subr.mxu0 0.0
    %1616 = vmatpush1.msra.mxu0 0.0
    %1617 = vmatprep.subr.mxu0 0.0
    %1618 = vmatpush1.msra.mxu0 0.0
    %1619 = vmatprep.subr.mxu0 0.0
    %1620 = vmatpush1.msra.mxu0 0.0
    %1621 = vmatprep.subr.mxu0 0.0
    %1622 = vmatpush1.msra.mxu0 0.0
    %1623 = vmatprep.subr.mxu0 0.0
    %1624 = vmatpush1.msra.mxu0 0.0
    %1625 = vmatprep.subr.mxu0 0.0
    %1626 = vmatpush1.msra.mxu0 0.0
    %1627 = vmatprep.subr.mxu0 0.0
    %1628 = vmatpush1.msra.mxu0 0.0
    %1629 = vmatprep.subr.mxu0 0.0
    %1630 = vmatpush1.msra.mxu0 0.0
    %1631 = vmatprep.subr.mxu0 0.0
    %1632 = vmatpush1.msra.mxu0 %v1446
    %1633 = vmatprep.subr.mxu0 0.0
    %1634 = vmatpush1.msra.mxu0 %v1445
    %1635 = vmatprep.subr.mxu0 0.0
    %1636 = vmatpush1.msra.mxu0 %v1444
    %1637 = vmatprep.subr.mxu0 0.0
    %1638 = vmatpush1.msra.mxu0 %v1443
    %1639 = vmatprep.subr.mxu0 0.0
    %1640 = vmatpush2.msra.mxu0 0.0
    %1641 = vmatprep.subr.mxu0 0.0
    %1642 = vmatpush2.msra.mxu0 0.0
    %1643 = vmatprep.subr.mxu0 0.0
    %1644 = vmatpush2.msra.mxu0 0.0
    %1645 = vmatprep.subr.mxu0 0.0
    %1646 = vmatpush2.msra.mxu0 0.0
    %1647 = vmatprep.subr.mxu0 0.0
    %1648 = vmatpush2.msra.mxu0 0.0
    %1649 = vmatprep.subr.mxu0 0.0
    %1650 = vmatpush2.msra.mxu0 0.0
    %1651 = vmatprep.subr.mxu0 0.0
    %1652 = vmatpush2.msra.mxu0 0.0
    %1653 = vmatprep.subr.mxu0 0.0
    %1654 = vmatpush2.msra.mxu0 0.0
    %1655 = vmatprep.subr.mxu0 0.0
    %1656 = vmatpush2.msra.mxu0 0.0
    %1657 = vmatprep.subr.mxu0 0.0
    %1658 = vmatpush2.msra.mxu0 0.0
    %1659 = vmatprep.subr.mxu0 0.0
    %1660 = vmatpush2.msra.mxu0 0.0
    %1661 = vmatprep.subr.mxu0 0.0
    %1662 = vmatpush2.msra.mxu0 0.0
    %1663 = vmatprep.subr.mxu0 0.0
    %1664 = vmatpush2.msra.mxu0 0.0
    %1665 = vmatprep.subr.mxu0 0.0
    %1666 = vmatpush2.msra.mxu0 0.0
    %1667 = vmatprep.subr.mxu0 0.0
    %1668 = vmatpush2.msra.mxu0 0.0
    %1669 = vmatprep.subr.mxu0 0.0
    %1670 = vmatpush2.msra.mxu0 0.0
    %1671 = vmatprep.mubr.f32.mxu0 0.0
    %1672 = vmatmul.mubr.f32.gmra.mxu0 %v1605
    %v1673 = vpop.f32.mrf.mxu0
    %v1674 = vadd.f32 %v1453, %v1673
    %v1675 = vpop.f32.mrf.mxu0
    %1676 = vdwg.mxu0
    %v1677 = vld [vmem:[#allocation7] sm:$0xff]
    %v1678 = vld [vmem:[#allocation7 + $0x8] sm:$0xff]
    %v1679 = vld [vmem:[#allocation7 + $0x10] sm:$0xff]
    %v1680 = vld [vmem:[#allocation7 + $0x18] sm:$0xff]
    %v1682 = vsel %vm1455, 0.0, 0
    %1684 = vmatprep.subr.mxu0 0.0
    %1685 = vmatpush1.msra.mxu0 0.0
    %1686 = vmatprep.subr.mxu0 0.0
    %1687 = vmatpush1.msra.mxu0 0.0
    %1688 = vmatprep.subr.mxu0 0.0
    %1689 = vmatpush1.msra.mxu0 0.0
    %1690 = vmatprep.subr.mxu0 0.0
    %1691 = vmatpush1.msra.mxu0 0.0
    %1692 = vmatprep.subr.mxu0 0.0
    %1693 = vmatpush1.msra.mxu0 0.0
    %1694 = vmatprep.subr.mxu0 0.0
    %1695 = vmatpush1.msra.mxu0 0.0
    %1696 = vmatprep.subr.mxu0 0.0
    %1697 = vmatpush1.msra.mxu0 0.0
    %1698 = vmatprep.subr.mxu0 0.0
    %1699 = vmatpush1.msra.mxu0 0.0
    %1700 = vmatprep.subr.mxu0 0.0
    %1701 = vmatpush1.msra.mxu0 0.0
    %1702 = vmatprep.subr.mxu0 0.0
    %1703 = vmatpush1.msra.mxu0 0.0
    %1704 = vmatprep.subr.mxu0 0.0
    %1705 = vmatpush1.msra.mxu0 0.0
    %1706 = vmatprep.subr.mxu0 0.0
    %1707 = vmatpush1.msra.mxu0 0.0
    %1708 = vmatprep.subr.mxu0 0.0
    %1709 = vmatpush1.msra.mxu0 %v1680
    %1710 = vmatprep.subr.mxu0 0.0
    %1711 = vmatpush1.msra.mxu0 %v1679
    %1712 = vmatprep.subr.mxu0 0.0
    %1713 = vmatpush1.msra.mxu0 %v1678
    %1714 = vmatprep.subr.mxu0 0.0
    %1715 = vmatpush1.msra.mxu0 %v1677
    %1716 = vmatprep.subr.mxu0 0.0
    %1717 = vmatpush2.msra.mxu0 0.0
    %1718 = vmatprep.subr.mxu0 0.0
    %1719 = vmatpush2.msra.mxu0 0.0
    %1720 = vmatprep.subr.mxu0 0.0
    %1721 = vmatpush2.msra.mxu0 0.0
    %1722 = vmatprep.subr.mxu0 0.0
    %1723 = vmatpush2.msra.mxu0 0.0
    %1724 = vmatprep.subr.mxu0 0.0
    %1725 = vmatpush2.msra.mxu0 0.0
    %1726 = vmatprep.subr.mxu0 0.0
    %1727 = vmatpush2.msra.mxu0 0.0
    %1728 = vmatprep.subr.mxu0 0.0
    %1729 = vmatpush2.msra.mxu0 0.0
    %1730 = vmatprep.subr.mxu0 0.0
    %1731 = vmatpush2.msra.mxu0 0.0
    %1732 = vmatprep.subr.mxu0 0.0
    %1733 = vmatpush2.msra.mxu0 0.0
    %1734 = vmatprep.subr.mxu0 0.0
    %1735 = vmatpush2.msra.mxu0 0.0
    %1736 = vmatprep.subr.mxu0 0.0
    %1737 = vmatpush2.msra.mxu0 0.0
    %1738 = vmatprep.subr.mxu0 0.0
    %1739 = vmatpush2.msra.mxu0 0.0
    %1740 = vmatprep.subr.mxu0 0.0
    %1741 = vmatpush2.msra.mxu0 0.0
    %1742 = vmatprep.subr.mxu0 0.0
    %1743 = vmatpush2.msra.mxu0 0.0
    %1744 = vmatprep.subr.mxu0 0.0
    %1745 = vmatpush2.msra.mxu0 0.0
    %1746 = vmatprep.subr.mxu0 0.0
    %1747 = vmatpush2.msra.mxu0 0.0
    %1748 = vmatprep.mubr.f32.mxu0 0.0
    %1749 = vmatmul.mubr.f32.gmra.mxu0 %v1682
    %v1750 = vpop.f32.mrf.mxu0
    %v1751 = vadd.f32 0.0, %v1750
    %v1752 = vpop.f32.mrf.mxu0
    %1753 = vdwg.mxu0
    %v1754 = vadd.f32 %v1526, %v1751
    %v1755 = vxor.u32 %v1754, 2147483648
    %v1756 = vmul.f32 %v1755, 1.442695
    %v1757 = vpow.pop %v1756
    %v1758 = vadd.f32 %v1757, 1.0
    %v1759 = vrcp.pop %v1758
    %v1760 = vmul.f32 1.0, %v1759
    %v1761 = vtanh.pop %v1754
    %v1762 = vmul.f32 %v1760, 0.0
    %1764 = vrot.lane.b32.xlu0 %v1761, 64
    %v1765 = vpop.permute.xlu0 %1764
    %v1767 = vmul.f32 %v1760, %v1765
    %1769 = vrot.lane.b32.xlu0 %v1767, 32
    %v1770 = vpop.permute.xlu0 %1769
    %v1772 = vadd.f32 %v1762, %v1770
    %v1773 = vtanh.pop %v1772
    %1775 = vrot.lane.b32.xlu0 %v1773, 64
    %v1776 = vpop.permute.xlu0 %1775
    %v1778 = vmul.f32 %v1760, %v1776
    %1780 = vrot.lane.b32.xlu0 %v1778, 32
    %v1781 = vpop.permute.xlu0 %1780
    %v1782 = vsel %vm1455, %v1781, 0
    %1784 = vmatprep.subr.mxu0 0.0
    %1785 = vmatpush1.msra.mxu0 0.0
    %1786 = vmatprep.subr.mxu0 0.0
    %1787 = vmatpush1.msra.mxu0 0.0
    %1788 = vmatprep.subr.mxu0 0.0
    %1789 = vmatpush1.msra.mxu0 0.0
    %1790 = vmatprep.subr.mxu0 0.0
    %1791 = vmatpush1.msra.mxu0 0.0
    %1792 = vmatprep.subr.mxu0 0.0
    %1793 = vmatpush1.msra.mxu0 0.0
    %1794 = vmatprep.subr.mxu0 0.0
    %1795 = vmatpush1.msra.mxu0 0.0
    %1796 = vmatprep.subr.mxu0 0.0
    %1797 = vmatpush1.msra.mxu0 0.0
    %1798 = vmatprep.subr.mxu0 0.0
    %1799 = vmatpush1.msra.mxu0 0.0
    %1800 = vmatprep.subr.mxu0 0.0
    %1801 = vmatpush1.msra.mxu0 0.0
    %1802 = vmatprep.subr.mxu0 0.0
    %1803 = vmatpush1.msra.mxu0 0.0
    %1804 = vmatprep.subr.mxu0 0.0
    %1805 = vmatpush1.msra.mxu0 0.0
    %1806 = vmatprep.subr.mxu0 0.0
    %1807 = vmatpush1.msra.mxu0 0.0
    %1808 = vmatprep.subr.mxu0 0.0
    %1809 = vmatpush1.msra.mxu0 %v1680
    %1810 = vmatprep.subr.mxu0 0.0
    %1811 = vmatpush1.msra.mxu0 %v1679
    %1812 = vmatprep.subr.mxu0 0.0
    %1813 = vmatpush1.msra.mxu0 %v1678
    %1814 = vmatprep.subr.mxu0 0.0
    %1815 = vmatpush1.msra.mxu0 %v1677
    %1816 = vmatprep.subr.mxu0 0.0
    %1817 = vmatpush2.msra.mxu0 0.0
    %1818 = vmatprep.subr.mxu0 0.0
    %1819 = vmatpush2.msra.mxu0 0.0
    %1820 = vmatprep.subr.mxu0 0.0
    %1821 = vmatpush2.msra.mxu0 0.0
    %1822 = vmatprep.subr.mxu0 0.0
    %1823 = vmatpush2.msra.mxu0 0.0
    %1824 = vmatprep.subr.mxu0 0.0
    %1825 = vmatpush2.msra.mxu0 0.0
    %1826 = vmatprep.subr.mxu0 0.0
    %1827 = vmatpush2.msra.mxu0 0.0
    %1828 = vmatprep.subr.mxu0 0.0
    %1829 = vmatpush2.msra.mxu0 0.0
    %1830 = vmatprep.subr.mxu0 0.0
    %1831 = vmatpush2.msra.mxu0 0.0
    %1832 = vmatprep.subr.mxu0 0.0
    %1833 = vmatpush2.msra.mxu0 0.0
    %1834 = vmatprep.subr.mxu0 0.0
    %1835 = vmatpush2.msra.mxu0 0.0
    %1836 = vmatprep.subr.mxu0 0.0
    %1837 = vmatpush2.msra.mxu0 0.0
    %1838 = vmatprep.subr.mxu0 0.0
    %1839 = vmatpush2.msra.mxu0 0.0
    %1840 = vmatprep.subr.mxu0 0.0
    %1841 = vmatpush2.msra.mxu0 0.0
    %1842 = vmatprep.subr.mxu0 0.0
    %1843 = vmatpush2.msra.mxu0 0.0
    %1844 = vmatprep.subr.mxu0 0.0
    %1845 = vmatpush2.msra.mxu0 0.0
    %1846 = vmatprep.subr.mxu0 0.0
    %1847 = vmatpush2.msra.mxu0 0.0
    %1848 = vmatprep.mubr.f32.mxu0 0.0
    %1849 = vmatmul.mubr.f32.gmra.mxu0 %v1782
    %v1850 = vpop.f32.mrf.mxu0
    %v1851 = vadd.f32 0.0, %v1850
    %v1852 = vpop.f32.mrf.mxu0
    %1853 = vdwg.mxu0
    %v1854 = vadd.f32 %v1600, %v1851
    %v1855 = vxor.u32 %v1854, 2147483648
    %v1856 = vmul.f32 %v1855, 1.442695
    %v1857 = vpow.pop %v1856
    %v1858 = vadd.f32 %v1857, 1.0
    %v1859 = vrcp.pop %v1858
    %v1860 = vmul.f32 1.0, %v1859
    %v1861 = vtanh.pop %v1854
    %v1862 = vmul.f32 %v1860, %v1772
    %1864 = vrot.lane.b32.xlu0 %v1861, 64
    %v1865 = vpop.permute.xlu0 %1864
    %v1867 = vmul.f32 %v1860, %v1865
    %1869 = vrot.lane.b32.xlu0 %v1867, 32
    %v1870 = vpop.permute.xlu0 %1869
    %v1872 = vadd.f32 %v1862, %v1870
    %v1873 = vtanh.pop %v1872
    %1875 = vrot.lane.b32.xlu0 %v1873, 64
    %v1876 = vpop.permute.xlu0 %1875
    %v1878 = vmul.f32 %v1860, %v1876
    %1880 = vrot.lane.b32.xlu0 %v1878, 32
    %v1881 = vpop.permute.xlu0 %1880
    %v1882 = vsel %vm1455, %v1881, 0
    %1884 = vmatprep.subr.mxu0 0.0
    %1885 = vmatpush1.msra.mxu0 0.0
    %1886 = vmatprep.subr.mxu0 0.0
    %1887 = vmatpush1.msra.mxu0 0.0
    %1888 = vmatprep.subr.mxu0 0.0
    %1889 = vmatpush1.msra.mxu0 0.0
    %1890 = vmatprep.subr.mxu0 0.0
    %1891 = vmatpush1.msra.mxu0 0.0
    %1892 = vmatprep.subr.mxu0 0.0
    %1893 = vmatpush1.msra.mxu0 0.0
    %1894 = vmatprep.subr.mxu0 0.0
    %1895 = vmatpush1.msra.mxu0 0.0
    %1896 = vmatprep.subr.mxu0 0.0
    %1897 = vmatpush1.msra.mxu0 0.0
    %1898 = vmatprep.subr.mxu0 0.0
    %1899 = vmatpush1.msra.mxu0 0.0
    %1900 = vmatprep.subr.mxu0 0.0
    %1901 = vmatpush1.msra.mxu0 0.0
    %1902 = vmatprep.subr.mxu0 0.0
    %1903 = vmatpush1.msra.mxu0 0.0
    %1904 = vmatprep.subr.mxu0 0.0
    %1905 = vmatpush1.msra.mxu0 0.0
    %1906 = vmatprep.subr.mxu0 0.0
    %1907 = vmatpush1.msra.mxu0 0.0
    %1908 = vmatprep.subr.mxu0 0.0
    %1909 = vmatpush1.msra.mxu0 %v1680
    %1910 = vmatprep.subr.mxu0 0.0
    %1911 = vmatpush1.msra.mxu0 %v1679
    %1912 = vmatprep.subr.mxu0 0.0
    %1913 = vmatpush1.msra.mxu0 %v1678
    %1914 = vmatprep.subr.mxu0 0.0
    %1915 = vmatpush1.msra.mxu0 %v1677
    %1916 = vmatprep.subr.mxu0 0.0
    %1917 = vmatpush2.msra.mxu0 0.0
    %1918 = vmatprep.subr.mxu0 0.0
    %1919 = vmatpush2.msra.mxu0 0.0
    %1920 = vmatprep.subr.mxu0 0.0
    %1921 = vmatpush2.msra.mxu0 0.0
    %1922 = vmatprep.subr.mxu0 0.0
    %1923 = vmatpush2.msra.mxu0 0.0
    %1924 = vmatprep.subr.mxu0 0.0
    %1925 = vmatpush2.msra.mxu0 0.0
    %1926 = vmatprep.subr.mxu0 0.0
    %1927 = vmatpush2.msra.mxu0 0.0
    %1928 = vmatprep.subr.mxu0 0.0
    %1929 = vmatpush2.msra.mxu0 0.0
    %1930 = vmatprep.subr.mxu0 0.0
    %1931 = vmatpush2.msra.mxu0 0.0
    %1932 = vmatprep.subr.mxu0 0.0
    %1933 = vmatpush2.msra.mxu0 0.0
    %1934 = vmatprep.subr.mxu0 0.0
    %1935 = vmatpush2.msra.mxu0 0.0
    %1936 = vmatprep.subr.mxu0 0.0
    %1937 = vmatpush2.msra.mxu0 0.0
    %1938 = vmatprep.subr.mxu0 0.0
    %1939 = vmatpush2.msra.mxu0 0.0
    %1940 = vmatprep.subr.mxu0 0.0
    %1941 = vmatpush2.msra.mxu0 0.0
    %1942 = vmatprep.subr.mxu0 0.0
    %1943 = vmatpush2.msra.mxu0 0.0
    %1944 = vmatprep.subr.mxu0 0.0
    %1945 = vmatpush2.msra.mxu0 0.0
    %1946 = vmatprep.subr.mxu0 0.0
    %1947 = vmatpush2.msra.mxu0 0.0
    %1948 = vmatprep.mubr.f32.mxu0 0.0
    %1949 = vmatmul.mubr.f32.gmra.mxu0 %v1882
    %v1950 = vpop.f32.mrf.mxu0
    %v1951 = vadd.f32 0.0, %v1950
    %v1952 = vpop.f32.mrf.mxu0
    %1953 = vdwg.mxu0
    %v1954 = vadd.f32 %v1674, %v1951
    %v1955 = vxor.u32 %v1954, 2147483648
    %v1956 = vmul.f32 %v1955, 1.442695
    %v1957 = vpow.pop %v1956
    %v1958 = vadd.f32 %v1957, 1.0
    %v1959 = vrcp.pop %v1958
    %v1960 = vmul.f32 1.0, %v1959
    %v1961 = vtanh.pop %v1954
    %v1962 = vmul.f32 %v1960, %v1872
    %1964 = vrot.lane.b32.xlu0 %v1961, 64
    %v1965 = vpop.permute.xlu0 %1964
    %v1967 = vmul.f32 %v1960, %v1965
    %1969 = vrot.lane.b32.xlu0 %v1967, 32
    %v1970 = vpop.permute.xlu0 %1969
    %v1972 = vadd.f32 %v1962, %v1970
    %v1973 = vtanh.pop %v1972
    %1975 = vrot.lane.b32.xlu0 %v1973, 64
    %v1976 = vpop.permute.xlu0 %1975
    %v1978 = vmul.f32 %v1960, %v1976
    %v1979 = vld [vmem:[%s6] sm:$0xff]
    %v1980 = vld [vmem:[%s6 + $0x8] sm:$0xff]
    %v1981 = vld [vmem:[%s6 + $0x10] sm:$0xff]
    %v1982 = vld [vmem:[%s6 + $0x18] sm:$0xff]
    %v1983 = vld [vmem:[%s7] sm:$0x1]
    %v1985 = vlaneseq
    %v1986 = vshrl.u32 %v1985, 7
    %v1987 = vsub.s32 0, %v1986
    %v1988 = vrot.slane %v1983, %v1987
    %1991 = vrot.lane.b32.xlu0 %v1978, 32
    %v1992 = vpop.permute.xlu0 %1991
    %v1993 = vsel %vm1455, %v1992, 0
    %1995 = vmatprep.subr.mxu0 0.0
    %1996 = vmatpush1.msra.mxu0 0.0
    %1997 = vmatprep.subr.mxu0 0.0
    %1998 = vmatpush1.msra.mxu0 0.0
    %1999 = vmatprep.subr.mxu0 0.0
    %2000 = vmatpush1.msra.mxu0 0.0
    %2001 = vmatprep.subr.mxu0 0.0
    %2002 = vmatpush1.msra.mxu0 0.0
    %2003 = vmatprep.subr.mxu0 0.0
    %2004 = vmatpush1.msra.mxu0 0.0
    %2005 = vmatprep.subr.mxu0 0.0
    %2006 = vmatpush1.msra.mxu0 0.0
    %2007 = vmatprep.subr.mxu0 0.0
    %2008 = vmatpush1.msra.mxu0 0.0
    %2009 = vmatprep.subr.mxu0 0.0
    %2010 = vmatpush1.msra.mxu0 0.0
    %2011 = vmatprep.subr.mxu0 0.0
    %2012 = vmatpush1.msra.mxu0 0.0
    %2013 = vmatprep.subr.mxu0 0.0
    %2014 = vmatpush1.msra.mxu0 0.0
    %2015 = vmatprep.subr.mxu0 0.0
    %2016 = vmatpush1.msra.mxu0 0.0
    %2017 = vmatprep.subr.mxu0 0.0
    %2018 = vmatpush1.msra.mxu0 0.0
    %2019 = vmatprep.subr.mxu0 0.0
    %2020 = vmatpush1.msra.mxu0 %v1982
    %2021 = vmatprep.subr.mxu0 0.0
    %2022 = vmatpush1.msra.mxu0 %v1981
    %2023 = vmatprep.subr.mxu0 0.0
    %2024 = vmatpush1.msra.mxu0 %v1980
    %2025 = vmatprep.subr.mxu0 0.0
    %2026 = vmatpush1.msra.mxu0 %v1979
    %2027 = vmatprep.subr.mxu0 0.0
    %2028 = vmatpush2.msra.mxu0 0.0
    %2029 = vmatprep.subr.mxu0 0.0
    %2030 = vmatpush2.msra.mxu0 0.0
    %2031 = vmatprep.subr.mxu0 0.0
    %2032 = vmatpush2.msra.mxu0 0.0
    %2033 = vmatprep.subr.mxu0 0.0
    %2034 = vmatpush2.msra.mxu0 0.0
    %2035 = vmatprep.subr.mxu0 0.0
    %2036 = vmatpush2.msra.mxu0 0.0
    %2037 = vmatprep.subr.mxu0 0.0
    %2038 = vmatpush2.msra.mxu0 0.0
    %2039 = vmatprep.subr.mxu0 0.0
    %2040 = vmatpush2.msra.mxu0 0.0
    %2041 = vmatprep.subr.mxu0 0.0
    %2042 = vmatpush2.msra.mxu0 0.0
    %2043 = vmatprep.subr.mxu0 0.0
    %2044 = vmatpush2.msra.mxu0 0.0
    %2045 = vmatprep.subr.mxu0 0.0
    %2046 = vmatpush2.msra.mxu0 0.0
    %2047 = vmatprep.subr.mxu0 0.0
    %2048 = vmatpush2.msra.mxu0 0.0
    %2049 = vmatprep.subr.mxu0 0.0
    %2050 = vmatpush2.msra.mxu0 0.0
    %2051 = vmatprep.subr.mxu0 0.0
    %2052 = vmatpush2.msra.mxu0 0.0
    %2053 = vmatprep.subr.mxu0 0.0
    %2054 = vmatpush2.msra.mxu0 0.0
    %2055 = vmatprep.subr.mxu0 0.0
    %2056 = vmatpush2.msra.mxu0 0.0
    %2057 = vmatprep.subr.mxu0 0.0
    %2058 = vmatpush2.msra.mxu0 0.0
    %2059 = vmatprep.mubr.f32.mxu0 0.0
    %2060 = vmatmul.mubr.f32.gmra.mxu0 %v1993
    %v2061 = vpop.f32.mrf.mxu0
    %v2062 = vadd.f32 %v1988, %v2061
    %v2063 = vpop.f32.mrf.mxu0
    %2064 = vdwg.mxu0
    %v2065 = vmax.f32 %v2062, 0.0
    %v2066 = vld [vmem:[%s8] sm:$0x1]
    %v2068 = vlaneseq
    %v2069 = vshrl.u32 %v2068, 7
    %v2070 = vsub.s32 0, %v2069
    %v2071 = vrot.slane %v2066, %v2070
    %v2073 = vmul.f32 %v2065, %v2071
    %vm2074 = vcmask 123904
    %v2075 = vsel %vm2074, %v2073, 0.0
    %2076 = vadd.xlane.f32.xlu0 %v2075
    %v2077 = vpop.xlane.xlu0 %2076
    %v2078 = vld [vmem:[#allocation2] sm:$0x1]
    %v2080 = vlaneseq
    %v2081 = vshrl.u32 %v2080, 7
    %v2082 = vsub.s32 0, %v2081
    %v2083 = vrot.slane %v2078, %v2082
    %v2085 = vadd.f32 %v2077, %v2083
    %vm2086 = vcmask 1024
    %2087 = vst.msk [vmem:[%s10] sm:$0x3] %vm2086, %v2085
    // Predicated region
    $region54: #{tpu_custom_call.1} parent=1 // pred_check
      _
    $region55: #{tpu_custom_call.1} parent=1 // pred_check_branch
      %2089 = sbr.rel (0) target = $region57
    $region56: #{tpu_custom_call.1} parent=1 // pred_region
      _
    $region57: #{tpu_custom_call.1} parent=1 // pred_fallthru
      _
    // Predicated region
    $region58: #{tpu_custom_call.1} parent=1 // pred_check
      _
    $region59: #{tpu_custom_call.1} parent=1 // pred_check_branch
      %2091 = sbr.rel (0) target = $region61
    $region60: #{tpu_custom_call.1} parent=1 // pred_region
      _
    $region61: #{tpu_custom_call.1} parent=1 // pred_fallthru
      _
    %2092 = vsyncpa [#allocation4], 1
    %2093 = vsyncpa [#allocation6], 1

</llo_original>
